<compile_context>
chip_gen: v5e
topology: v5e:2x2
jax: 0.10.0
libtpu: 0.0.40
codegen_flags: <defaults>
</compile_context>

<pallas_src>
import functools

import numpy as np
import jax
import jax.numpy as jnp
from jax.experimental import pallas as pl
from jax.experimental.pallas import tpu as pltpu

LANE = 128                       # TPU lane width: attention output padded to it
VMEM_LIMIT = 48 * 1024 * 1024    # explicit scoped-VMEM limit, safe on v5e/v6e/v7x


# ----------------------------------------------------------------------------
# Stage 1: fused f_key|f_value 1x1 conv + BatchNorm statistics
# ----------------------------------------------------------------------------
def feature_kernel(x_ref, w_ref, b_ref, feat_ref, stats_ref, *,
                   n_tokens, key_channels):
    """One token tile of the fused [f_key | f_value] 1x1 conv + BN statistics.

    x_ref:     (TT, C)       input tokens (rows >= n_tokens are OOB padding)
    w_ref:     (C, Ck+Cv)    [wk | wv] fused weight  (resident)
    b_ref:     (1, Ck+Cv)    [bk | bv] fused bias    (resident)
    feat_ref:  (TT, Ck+Cv)   pre-BN key features | value features
    stats_ref: (1, 2*Ck)     [sum(kpre) | sum(kpre^2)] accumulated over the grid
    """
    @pl.when(pl.program_id(0) == 0)
    def _init():
        stats_ref[...] = jnp.zeros_like(stats_ref)

    # One MXU push for both 1x1 convs (halves launch count; K = C is tiny).
    # Kept in f32: BN rescales by 1/std afterwards which would amplify bf16
    # quantization of the conv output, and at K=4 this matmul is not MXU-bound.
    feat = jnp.dot(x_ref[...], w_ref[...],
                   preferred_element_type=jnp.float32) + b_ref[...]
    feat_ref[...] = feat

    # BatchNorm2d (train-mode) statistics over ALL N*H*W tokens: accumulate
    # per-channel sum / sum-of-squares, masking rows of the padded last tile.
    tt = x_ref.shape[0]
    row = pl.program_id(0) * tt + jax.lax.broadcasted_iota(jnp.int32, (tt, 1), 0)
    kpre = jnp.where(row < n_tokens, feat[:, :key_channels], 0.0)
    s1 = jnp.sum(kpre, axis=0, keepdims=True)
    s2 = jnp.sum(kpre * kpre, axis=0, keepdims=True)
    stats_ref[...] += jnp.concatenate([s1, s2], axis=1)


# ----------------------------------------------------------------------------
# Stage 2: non-local attention, tiled over (batch, query-tile)
# ----------------------------------------------------------------------------
def attention_kernel(kq_ref, bn_ref, kp_ref, vc_ref, add_ref, out_ref, *,
                     out_channels, hw, pooled_dims, sigma):
    """One (batch, L-tile) grid cell.

    kq_ref:  (1, TQ, Ck)   pre-BN key/query features for this tile (f32)
    bn_ref:  (2, Ck)       row 0 = BN mean, row 1 = rsqrt(var + eps)
    kp_ref:  (1, Np, Ck)   pooled key, BN+ReLU'd and pre-scaled by Ck^-0.5 (bf16)
    vc_ref:  (1, Np, 128)  [pooled_value @ W | -Pp | 0] lane-padded value matrix (bf16)
    add_ref: (1, 128)      [W bias | 0] epilogue addend
    out_ref: (1, TQ, 128)  [context | dp | 0] lane-dense output slab
    """
    h, w = hw
    tq = kq_ref.shape[1]
    np_tok = kp_ref.shape[1]
    lane = out_ref.shape[2]
    q0 = pl.program_id(1) * tq

    # f_query == f_key: BN(train-mode stats) + ReLU on the query tile, bf16 for MXU.
    mean = bn_ref[0:1, :]
    rstd = bn_ref[1:2, :]
    q = jnp.maximum((kq_ref[0] - mean) * rstd, 0.0).astype(jnp.bfloat16)     # (TQ, Ck)

    # sim = (q . k^T) * Ck^-0.5  (scale pre-folded into k).  dot_general with
    # contracting dims ((1,),(1,)) avoids materialising a transpose of k.
    sim = jax.lax.dot_general(q, kp_ref[0], (((1,), (1,)), ((), ())),
                              preferred_element_type=jnp.float32)            # (TQ, Np)

    # logW tile generated in-kernel (a handful of VPU ops) instead of streaming
    # the (L, Np) f32 matrix from HBM: logW = -0.5*((X0-Xp)^2+(Y0-Yp)^2)/sigma^2.
    ridx = (q0 + jax.lax.broadcasted_iota(jnp.int32, (tq, 1), 0)).astype(jnp.float32)
    y0 = jnp.floor(ridx / w)
    x0 = ridx - y0 * w
    X0 = x0 / w                                                              # (TQ, 1)
    Y0 = y0 / h
    cidx = jax.lax.broadcasted_iota(jnp.int32, (1, np_tok), 1).astype(jnp.float32)
    Xp = jnp.zeros((1, np_tok), jnp.float32)
    Yp = jnp.zeros((1, np_tok), jnp.float32)
    off = 0
    for hp, wp in pooled_dims:                 # static PSP pyramid levels
        local = cidx - off
        yp = jnp.floor(local / wp)
        xp = local - yp * wp
        in_level = (local >= 0) & (local < hp * wp)
        Xp = jnp.where(in_level, xp / wp, Xp)
        Yp = jnp.where(in_level, yp / hp, Yp)
        off += hp * wp
    dx = X0 - Xp
    dy = Y0 - Yp
    sim = sim + (-0.5 / (sigma * sigma)) * (dx * dx + dy * dy)

    # Softmax over the pooled axis; divide goes to the EUP via approx reciprocal.
    sim = sim - jnp.max(sim, axis=-1, keepdims=True)
    e = jnp.exp(sim)
    p = e * pl.reciprocal(jnp.sum(e, axis=-1, keepdims=True), approx=True)

    # One lane-dense MXU contraction covers both context@W and the Pp projection.
    slab = jnp.dot(p.astype(jnp.bfloat16), vc_ref[0],
                   preferred_element_type=jnp.float32)                       # (TQ, 128)

    # Epilogue: + W bias in the context lanes, + P0 in the two dp lanes.
    ocol = jax.lax.broadcasted_iota(jnp.int32, (1, lane), 1)
    p0 = (jnp.where(ocol == out_channels, X0, 0.0)
          + jnp.where(ocol == out_channels + 1, Y0, 0.0))                    # (TQ, 128)
    out_ref[0] = slab + add_ref[...] + p0


# ----------------------------------------------------------------------------
# PSP helpers (constants + pooling); pooling is glue (lax.reduce_window)
# ----------------------------------------------------------------------------
def psp_constants(h, w, pool_iter=1, sigma=0.2):
    def grid(hh, ww):
        X, Y = np.meshgrid(np.arange(ww), np.arange(hh))
        return (X.astype(np.float32) / ww).ravel(), (Y.astype(np.float32) / hh).ravel()

    X0, Y0 = grid(h, w)
    Xp, Yp = [], []
    hh, ww = h, w
    for _ in range(pool_iter):
        hh //= 2
        ww //= 2
        X, Y = grid(hh, ww)
        Xp.append(X)
        Yp.append(Y)
    Xp = np.hstack(Xp)
    Yp = np.hstack(Yp)
    dx = X0[:, None] - Xp[None, :]
    dy = Y0[:, None] - Yp[None, :]
    logW = (-0.5 * (dx * dx + dy * dy) / sigma / sigma).astype(np.float32)   # (L, Np)
    P0 = np.stack([X0, Y0], axis=1).astype(np.float32)                       # (L, 2)
    Pp = np.stack([Xp, Yp], axis=1).astype(np.float32)                       # (Np, 2)
    return jnp.asarray(logW), jnp.asarray(P0), jnp.asarray(Pp)


def psp_level_dims(h, w, pool_iter=1):
    """Per-level pooled grid sizes; asserts the PSPModule coordinate grid (//2)
    matches the actual MaxPool2d(3, 2, pad=0) output sizes (module precondition)."""
    dims = []
    ch, cw = h, w
    ah, aw = h, w
    for _ in range(pool_iter):
        ch, cw = ch // 2, cw // 2
        ah, aw = (ah - 3) // 2 + 1, (aw - 3) // 2 + 1
        assert (ch, cw) == (ah, aw), "PSP grid vs MaxPool size mismatch (need odd H/W)"
        dims.append((ch, cw))
    return tuple(dims)


def psp_pool(feat_nlc, h, w, pool_iter=1):
    """MaxPool2d(kernel=3, stride=2, pad=0) applied pool_iter times,
    flatten + concat pooled tokens.  feat_nlc: (N, L, C) -> (N, Np, C)."""
    # TODO(synk): the PSP max-pool pyramid stays as lax.reduce_window glue; an
    # in-kernel windowed-max would need a dedicated gather/pool Pallas kernel.
    n, _, c = feat_nlc.shape
    cur = feat_nlc.reshape(n, h, w, c)
    outs = []
    for _ in range(pool_iter):
        cur = jax.lax.reduce_window(cur, -jnp.inf, jax.lax.max,
                                    (1, 3, 3, 1), (1, 2, 2, 1), "VALID")
        outs.append(cur.reshape(n, -1, c))
    return jnp.concatenate(outs, axis=1)


# ----------------------------------------------------------------------------
# Wrapper: full _SelfAttentionBlock forward
# ----------------------------------------------------------------------------
def self_attention_block(x, params, *, key_channels, value_channels,
                         out_channels, pool_iter=1, sigma=0.2,
                         token_tile=128, query_tile=128):
    """query_tile/token_tile bound per-step VMEM and enable double-buffering.
    Sizing guide: the attention step holds ~3 f32 (TQ, Np) temporaries plus the
    resident bf16 (Np, 128) value matrix -- on v7x (64 MiB VMEM/TC) keep
    TQ ~ 256 for pooled counts in the low thousands; v5e/v6e (128 MiB) can use
    512-1024.  Both grid axes of the attention call are 'parallel' (megacore)."""
    n, c, h, w = x.shape
    L = h * w
    ntok = n * L
    ck, cv, co = key_channels, value_channels, out_channels
    assert co + 2 <= LANE

    x_tok = jnp.transpose(x, (0, 2, 3, 1)).reshape(ntok, c)

    # ---- stage 1: fused f_key|f_value conv + global BN statistics ----------
    w_fused = jnp.concatenate([params["wk"], params["wv"]], axis=1)      # (C, Ck+Cv)
    b_fused = jnp.concatenate([params["bk"], params["bv"]], axis=1)      # (1, Ck+Cv)
    ckv = ck + cv

    tt = ntok if ntok <= token_tile else token_tile
    assert tt == ntok or tt % 8 == 0
    feat, stats = pl.pallas_call(
        functools.partial(feature_kernel, n_tokens=ntok, key_channels=ck),
        grid=(pl.cdiv(ntok, tt),),
        in_specs=[
            pl.BlockSpec((tt, c), lambda i: (i, 0)),
            pl.BlockSpec((c, ckv), lambda i: (0, 0)),
            pl.BlockSpec((1, ckv), lambda i: (0, 0)),
        ],
        out_specs=[
            pl.BlockSpec((tt, ckv), lambda i: (i, 0)),
            pl.BlockSpec((1, 2 * ck), lambda i: (0, 0)),    # resident accumulator
        ],
        out_shape=(jax.ShapeDtypeStruct((ntok, ckv), jnp.float32),
                   jax.ShapeDtypeStruct((1, 2 * ck), jnp.float32)),
        compiler_params=pltpu.CompilerParams(
            dimension_semantics=("arbitrary",),             # BN-stats reduction axis
            vmem_limit_bytes=VMEM_LIMIT),
    )(x_tok, w_fused, b_fused)

    mean = stats[0, :ck] / ntok
    var = jnp.maximum(stats[0, ck:] / ntok - mean * mean, 0.0)
    rstd = jax.lax.rsqrt(var + 1e-5)
    bn = jnp.concatenate([mean[None, :], rstd[None, :]], axis=0)          # (2, Ck)

    kpre = feat[:, :ck].reshape(n, L, ck)     # pre-BN key/query features
    vpre = feat[:, ck:].reshape(n, L, cv)     # value features (no BN/ReLU)

    # ---- PSP pooling (plain-JAX glue).  BN+ReLU is per-channel monotone
    # (rstd > 0), so it commutes exactly with the spatial max: pool the pre-BN
    # key map and normalise the tiny pooled result instead of materialising a
    # second full-resolution normalised key map. --------------------------------
    levels = psp_level_dims(h, w, pool_iter)
    kpre_p = psp_pool(kpre, h, w, pool_iter)                              # (N, Np, Ck)
    val_p = psp_pool(vpre, h, w, pool_iter)                               # (N, Np, Cv)
    np_tok = kpre_p.shape[1]
    assert np_tok == sum(hp * wp for hp, wp in levels)

    scale = ck ** (-0.5)                       # fold 1/sqrt(Ck) into the pooled key
    key_p = (jnp.maximum((kpre_p - mean) * rstd, 0.0) * scale).astype(jnp.bfloat16)

    # Fold the W 1x1 conv and the Pp projection into one lane-padded value matrix:
    # columns [0:Co) = pooled_value @ W,  [Co:Co+2) = -Pp,  rest zero.
    ctx_w = jnp.einsum("npv,vo->npo", val_p, params["ww"])
    pp = jnp.broadcast_to(params["Pp"][None], (n, np_tok, 2))
    v_cat = jnp.concatenate(
        [ctx_w, -pp, jnp.zeros((n, np_tok, LANE - co - 2), jnp.float32)],
        axis=-1).astype(jnp.bfloat16)                                     # (N, Np, 128)
    add_row = jnp.concatenate(
        [params["wb"], jnp.zeros((1, LANE - co), jnp.float32)], axis=1)   # (1, 128)

    # ---- stage 2: attention, tiled over (batch, L-tile) ---------------------
    tq = L if L <= query_tile else query_tile
    assert tq == L or tq % 8 == 0
    kernel = functools.partial(attention_kernel, out_channels=co, hw=(h, w),
                               pooled_dims=levels, sigma=sigma)
    out_pad = pl.pallas_call(
        kernel,
        grid=(n, pl.cdiv(L, tq)),
        in_specs=[
            pl.BlockSpec((1, tq, ck), lambda b, t: (b, t, 0)),        # query tile
            pl.BlockSpec((2, ck), lambda b, t: (0, 0)),               # BN mean/rstd
            pl.BlockSpec((1, np_tok, ck), lambda b, t: (b, 0, 0)),    # pooled key (resident)
            pl.BlockSpec((1, np_tok, LANE), lambda b, t: (b, 0, 0)),  # [V@W | -Pp] (resident)
            pl.BlockSpec((1, LANE), lambda b, t: (0, 0)),             # epilogue addend
        ],
        out_specs=pl.BlockSpec((1, tq, LANE), lambda b, t: (b, t, 0)),
        out_shape=jax.ShapeDtypeStruct((n, L, LANE), jnp.float32),
        compiler_params=pltpu.CompilerParams(
            dimension_semantics=("parallel", "parallel"),
            vmem_limit_bytes=VMEM_LIMIT),
    )(kpre, bn, key_p, v_cat, add_row)

    ctx = out_pad[:, :, :co]
    dp = out_pad[:, :, co:co + 2]
    # context: (N, L, Co) -> (N, Co, H, W)  (matches torch permute + view)
    context = jnp.transpose(ctx, (0, 2, 1)).reshape(n, co, h, w)
    # dp: torch does .view(N, 2, H, W) with NO transpose -> plain reshape too.
    dp_nchw = dp.reshape(n, 2, h, w)
    return jnp.concatenate([context, dp_nchw], axis=1)


# ----------------------------------------------------------------------------
# Pure-JAX reference (mirrors the PyTorch forward) for verification
# ----------------------------------------------------------------------------
def reference_forward(x, params, *, key_channels, value_channels,
                      out_channels, pool_iter=1):
    n, c, h, w = x.shape
    L = h * w
    hi = jax.lax.Precision.HIGHEST
    x_tok = jnp.transpose(x, (0, 2, 3, 1)).reshape(n * L, c)
    kpre = jnp.dot(x_tok, params["wk"], precision=hi) + params["bk"]
    mean = jnp.mean(kpre, axis=0, keepdims=True)
    var = jnp.mean(jnp.square(kpre - mean), axis=0, keepdims=True)
    key_feat = jnp.maximum((kpre - mean) / jnp.sqrt(var + 1e-5), 0.0).reshape(n, L, key_channels)
    val_feat = (jnp.dot(x_tok, params["wv"], precision=hi) + params["bv"]).reshape(n, L, value_channels)
    key_p = psp_pool(key_feat, h, w, pool_iter)
    val_p = psp_pool(val_feat, h, w, pool_iter)
    sim = jnp.einsum("nlk,npk->nlp", key_feat, key_p, precision=hi) * key_channels ** (-0.5)
    sim = sim + params["logW"][None]
    sim = jax.nn.softmax(sim, axis=-1)
    ctx = jnp.einsum("nlp,npv->nlv", sim, val_p, precision=hi)
    ctx = jnp.dot(ctx, params["ww"], precision=hi) + params["wb"]
    context = jnp.transpose(ctx, (0, 2, 1)).reshape(n, out_channels, h, w)
    dp = params["P0"][None] - jnp.einsum("nlp,pt->nlt", sim, params["Pp"], precision=hi)
    dp = dp.reshape(n, 2, h, w)
    return jnp.concatenate([context, dp], axis=1)


# ----------------------------------------------------------------------------
if __name__ == "__main__":
    # H, W odd so the PSPModule coordinate grid (H//2) matches the
    # MaxPool2d(3, 2, pad=0) output size -- a precondition of the torch module.
    N, C_IN, H, W = 2, 4, 15, 15
    KEY_C, VAL_C, OUT_C = 8, 8, 4
    POOL_ITER = 1

    key = jax.random.PRNGKey(0)
    kx, k1, k2, k3, k4 = jax.random.split(key, 5)
    x = jax.random.normal(kx, (N, C_IN, H, W), dtype=jnp.float32)

    logW, P0, Pp = psp_constants(H, W, POOL_ITER, sigma=0.2)
    params = {
        # f_key conv1x1: torch weight (Ck, C, 1, 1) -> stored as (C, Ck)
        "wk": 0.1 * jax.random.normal(k1, (C_IN, KEY_C), dtype=jnp.float32),
        "bk": 0.1 * jax.random.normal(k2, (1, KEY_C), dtype=jnp.float32),
        # f_value conv1x1
        "wv": 0.1 * jax.random.normal(k3, (C_IN, VAL_C), dtype=jnp.float32),
        "bv": 0.1 * jax.random.normal(k4, (1, VAL_C), dtype=jnp.float32),
        # W conv1x1: nn.init.constant_(weight, 0), constant_(bias, 0)
        "ww": jnp.zeros((VAL_C, OUT_C), dtype=jnp.float32),
        "wb": jnp.zeros((1, OUT_C), dtype=jnp.float32),
        "logW": logW, "P0": P0, "Pp": Pp,     # used by the reference only
    }

    run = jax.jit(functools.partial(
        self_attention_block, key_channels=KEY_C, value_channels=VAL_C,
        out_channels=OUT_C, pool_iter=POOL_ITER, sigma=0.2,
        token_tile=128, query_tile=128))
    out = jax.block_until_ready(run(x, params))
    assert out.shape == (N, OUT_C + 2, H, W), out.shape

    ref = reference_forward(x, params, key_channels=KEY_C, value_channels=VAL_C,
                            out_channels=OUT_C, pool_iter=POOL_ITER)
    np.testing.assert_allclose(np.asarray(out), np.asarray(ref), rtol=2e-2, atol=2e-2)

    print("KERNEL_OK")
</pallas_src>

<mosaic_0001>
module attributes {stable_mosaic.version = 11 : i64} {
  func.func @feature_kernel(%arg0: i32, %arg1: memref<128x4xf32, #tpu.memory_space<vmem>>, %arg2: memref<4x16xf32, #tpu.memory_space<vmem>>, %arg3: memref<1x16xf32, #tpu.memory_space<vmem>>, %arg4: memref<128x16xf32, #tpu.memory_space<vmem>>, %arg5: memref<1x16xf32, #tpu.memory_space<vmem>>) attributes {dimension_semantics = [#tpu.dimension_semantics<arbitrary>], iteration_bounds = array<i64: 4>, scalar_prefetch = 0 : i64, scratch_operands = 0 : i64, tpu.core_type = #tpu.core_type<tc>, window_params = [{transform_indices = @transform_0, window_bounds = array<i64: 128, 4>}, {pipeline_mode = #tpu.pipeline_mode<synchronous>, transform_indices = @transform_1, window_bounds = array<i64: 4, 16>}, {pipeline_mode = #tpu.pipeline_mode<synchronous>, transform_indices = @transform_2, window_bounds = array<i64: 1, 16>}, {transform_indices = @transform_3, window_bounds = array<i64: 128, 16>}, {pipeline_mode = #tpu.pipeline_mode<synchronous>, transform_indices = @transform_4, window_bounds = array<i64: 1, 16>}]} {
    %c0_i32 = arith.constant 0 : i32
    %0 = arith.cmpi eq, %arg0, %c0_i32 : i32
    %1 = arith.extui %0 : i1 to i32
    %c0_i32_0 = arith.constant 0 : i32
    %2 = arith.cmpi ne, %1, %c0_i32_0 : i32
    scf.if %2 {
      %cst_15 = arith.constant 0.000000e+00 : f32
      %30 = vector.broadcast %cst_15 : f32 to vector<1x16xf32>
      %c0_16 = arith.constant 0 : index
      %c0_17 = arith.constant 0 : index
      %31 = vector.load %arg5[%c0_16, %c0_17] : memref<1x16xf32, #tpu.memory_space<vmem>>, vector<1x16xf32>
      tpu.vector_store %arg5[%c0_16, %c0_17], %30 {strides = array<i32>} : memref<1x16xf32, #tpu.memory_space<vmem>>, vector<1x16xf32>,
    } else {
    }
    %c0 = arith.constant 0 : index
    %c0_1 = arith.constant 0 : index
    %3 = vector.load %arg1[%c0, %c0_1] : memref<128x4xf32, #tpu.memory_space<vmem>>, vector<128x4xf32>
    %c0_2 = arith.constant 0 : index
    %c0_3 = arith.constant 0 : index
    %4 = vector.load %arg2[%c0_2, %c0_3] : memref<4x16xf32, #tpu.memory_space<vmem>>, vector<4x16xf32>
    %cst = arith.constant dense<0.000000e+00> : vector<128x16xf32>
    %5 = tpu.matmul %3, %4, %cst {dimension_numbers = #tpu.dot_dimension_numbers<[1], [0], [0], [1], [0, 0, 1, 1], [], []>} : vector<128x4xf32>, vector<4x16xf32>, vector<128x16xf32> -> vector<128x16xf32>
    %c0_4 = arith.constant 0 : index
    %c0_5 = arith.constant 0 : index
    %6 = vector.load %arg3[%c0_4, %c0_5] : memref<1x16xf32, #tpu.memory_space<vmem>>, vector<1x16xf32>
    %7 = vector.broadcast %6 : vector<1x16xf32> to vector<128x16xf32>
    %8 = arith.addf %5, %7 : vector<128x16xf32>
    %c0_6 = arith.constant 0 : index
    %c0_7 = arith.constant 0 : index
    %9 = vector.load %arg4[%c0_6, %c0_7] : memref<128x16xf32, #tpu.memory_space<vmem>>, vector<128x16xf32>
    tpu.vector_store %arg4[%c0_6, %c0_7], %8 {strides = array<i32>} : memref<128x16xf32, #tpu.memory_space<vmem>>, vector<128x16xf32>,
    %c128_i32 = arith.constant 128 : i32
    %10 = arith.muli %arg0, %c128_i32 : i32
    %11 = tpu.iota {dimensions = array<i32: 0>} : vector<128x1xi32>
    %12 = vector.broadcast %10 : i32 to vector<128x1xi32>
    %13 = arith.addi %12, %11 : vector<128x1xi32>
    %c450_i32 = arith.constant 450 : i32
    %14 = vector.broadcast %c450_i32 : i32 to vector<128x1xi32>
    %15 = arith.cmpi slt, %13, %14 : vector<128x1xi32>
    %16 = vector.extract_strided_slice %8 {offsets = [0, 0], sizes = [128, 8], strides = [1, 1]} : vector<128x16xf32> to vector<128x8xf32>
    %cst_8 = arith.constant 0.000000e+00 : f32
    %17 = vector.shape_cast %15 : vector<128x1xi1> to vector<128x1xi1>
    %18 = vector.broadcast %17 : vector<128x1xi1> to vector<128x8xi1>
    %19 = vector.broadcast %cst_8 : f32 to vector<128x8xf32>
    %20 = arith.select %18, %16, %19 : vector<128x8xi1>, vector<128x8xf32>
    %cst_9 = arith.constant dense<0.000000e+00> : vector<8xf32>
    %21 = vector.multi_reduction <add>, %20, %cst_9 [0] : vector<128x8xf32> to vector<8xf32>
    %22 = vector.shape_cast %21 : vector<8xf32> to vector<1x8xf32>
    %23 = arith.mulf %20, %20 : vector<128x8xf32>
    %cst_10 = arith.constant dense<0.000000e+00> : vector<8xf32>
    %24 = vector.multi_reduction <add>, %23, %cst_10 [0] : vector<128x8xf32> to vector<8xf32>
    %25 = vector.shape_cast %24 : vector<8xf32> to vector<1x8xf32>
    %c0_11 = arith.constant 0 : index
    %c0_12 = arith.constant 0 : index
    %26 = vector.load %arg5[%c0_11, %c0_12] : memref<1x16xf32, #tpu.memory_space<vmem>>, vector<1x16xf32>
    %27 = tpu.concatenate %22, %25 in 1 : vector<1x8xf32>, vector<1x8xf32> -> vector<1x16xf32>
    %28 = arith.addf %26, %27 : vector<1x16xf32>
    %c0_13 = arith.constant 0 : index
    %c0_14 = arith.constant 0 : index
    %29 = vector.load %arg5[%c0_13, %c0_14] : memref<1x16xf32, #tpu.memory_space<vmem>>, vector<1x16xf32>
    tpu.vector_store %arg5[%c0_13, %c0_14], %28 {strides = array<i32>} : memref<1x16xf32, #tpu.memory_space<vmem>>, vector<1x16xf32>,
    return
  }
  func.func @transform_0(%arg0: i32) -> (i32, i32) {
    %c0_i32 = arith.constant 0 : i32
    %c0_i32_0 = arith.constant 0 : i32
    return %arg0, %c0_i32 : i32, i32
  }
  func.func @transform_1(%arg0: i32) -> (i32, i32) {
    %c0_i32 = arith.constant 0 : i32
    %c0_i32_0 = arith.constant 0 : i32
    %c0_i32_1 = arith.constant 0 : i32
    return %c0_i32, %c0_i32_0 : i32, i32
  }
  func.func @transform_2(%arg0: i32) -> (i32, i32) {
    %c0_i32 = arith.constant 0 : i32
    %c0_i32_0 = arith.constant 0 : i32
    %c0_i32_1 = arith.constant 0 : i32
    return %c0_i32, %c0_i32_0 : i32, i32
  }
  func.func @transform_3(%arg0: i32) -> (i32, i32) {
    %c0_i32 = arith.constant 0 : i32
    %c0_i32_0 = arith.constant 0 : i32
    return %arg0, %c0_i32 : i32, i32
  }
  func.func @transform_4(%arg0: i32) -> (i32, i32) {
    %c0_i32 = arith.constant 0 : i32
    %c0_i32_0 = arith.constant 0 : i32
    %c0_i32_1 = arith.constant 0 : i32
    return %c0_i32, %c0_i32_0 : i32, i32
  }
}

module attributes {stable_mosaic.version = 11 : i64} {
  func.func @attention_kernel(%arg0: i32, %arg1: i32, %arg2: memref<1x128x8xf32, #tpu.memory_space<vmem>>, %arg3: memref<2x8xf32, #tpu.memory_space<vmem>>, %arg4: memref<1x49x8xbf16, #tpu.memory_space<vmem>>, %arg5: memref<1x49x128xbf16, #tpu.memory_space<vmem>>, %arg6: memref<1x128xf32, #tpu.memory_space<vmem>>, %arg7: memref<1x128x128xf32, #tpu.memory_space<vmem>>) attributes {dimension_semantics = [#tpu.dimension_semantics<parallel>, #tpu.dimension_semantics<parallel>], iteration_bounds = array<i64: 2, 2>, scalar_prefetch = 0 : i64, scratch_operands = 0 : i64, tpu.core_type = #tpu.core_type<tc>, window_params = [{transform_indices = @transform_0, window_bounds = array<i64: 1, 128, 8>}, {pipeline_mode = #tpu.pipeline_mode<synchronous>, transform_indices = @transform_1, window_bounds = array<i64: 2, 8>}, {transform_indices = @transform_2, window_bounds = array<i64: 1, 49, 8>}, {transform_indices = @transform_3, window_bounds = array<i64: 1, 49, 128>}, {pipeline_mode = #tpu.pipeline_mode<synchronous>, transform_indices = @transform_4, window_bounds = array<i64: 1, 128>}, {transform_indices = @transform_5, window_bounds = array<i64: 1, 128, 128>}]} {
    %c128_i32 = arith.constant 128 : i32
    %0 = arith.muli %arg1, %c128_i32 : i32
    %c0 = arith.constant 0 : index
    %c0_0 = arith.constant 0 : index
    %1 = vector.load %arg3[%c0, %c0_0] : memref<2x8xf32, #tpu.memory_space<vmem>>, vector<1x8xf32>
    %c1 = arith.constant 1 : index
    %c0_1 = arith.constant 0 : index
    %2 = vector.load %arg3[%c1, %c0_1] : memref<2x8xf32, #tpu.memory_space<vmem>>, vector<1x8xf32>
    %c0_2 = arith.constant 0 : index
    %c0_3 = arith.constant 0 : index
    %c0_4 = arith.constant 0 : index
    %3 = vector.load %arg2[%c0_2, %c0_3, %c0_4] : memref<1x128x8xf32, #tpu.memory_space<vmem>>, vector<1x128x8xf32>
    %4 = vector.shape_cast %3 : vector<1x128x8xf32> to vector<128x8xf32>
    %5 = vector.broadcast %1 : vector<1x8xf32> to vector<128x8xf32>
    %6 = arith.subf %4, %5 : vector<128x8xf32>
    %7 = vector.broadcast %2 : vector<1x8xf32> to vector<128x8xf32>
    %8 = arith.mulf %6, %7 : vector<128x8xf32>
    %cst = arith.constant 0.000000e+00 : f32
    %9 = vector.broadcast %cst : f32 to vector<128x8xf32>
    %10 = arith.maximumf %8, %9 : vector<128x8xf32>
    %11 = arith.truncf %10 : vector<128x8xf32> to vector<128x8xbf16>
    %c0_5 = arith.constant 0 : index
    %c0_6 = arith.constant 0 : index
    %c0_7 = arith.constant 0 : index
    %12 = vector.load %arg4[%c0_5, %c0_6, %c0_7] : memref<1x49x8xbf16, #tpu.memory_space<vmem>>, vector<1x49x8xbf16>
    %13 = vector.shape_cast %12 : vector<1x49x8xbf16> to vector<49x8xbf16>
    %cst_8 = arith.constant dense<0.000000e+00> : vector<128x49xf32>
    %14 = tpu.matmul %11, %13, %cst_8 {dimension_numbers = #tpu.dot_dimension_numbers<[1], [1], [0], [0], [0, 0, 1, 0], [], []>} : vector<128x8xbf16>, vector<49x8xbf16>, vector<128x49xf32> -> vector<128x49xf32>
    %15 = tpu.iota {dimensions = array<i32: 0>} : vector<128x1xi32>
    %16 = vector.broadcast %0 : i32 to vector<128x1xi32>
    %17 = arith.addi %16, %15 : vector<128x1xi32>
    %18 = arith.sitofp %17 : vector<128x1xi32> to vector<128x1xf32>
    %cst_9 = arith.constant 1.500000e+01 : f32
    %19 = vector.broadcast %cst_9 : f32 to vector<128x1xf32>
    %20 = arith.divf %18, %19 : vector<128x1xf32>
    %21 = math.floor %20 : vector<128x1xf32>
    %cst_10 = arith.constant 1.500000e+01 : f32
    %22 = vector.broadcast %cst_10 : f32 to vector<128x1xf32>
    %23 = arith.mulf %21, %22 : vector<128x1xf32>
    %24 = arith.subf %18, %23 : vector<128x1xf32>
    %cst_11 = arith.constant 1.500000e+01 : f32
    %25 = vector.broadcast %cst_11 : f32 to vector<128x1xf32>
    %26 = arith.divf %24, %25 : vector<128x1xf32>
    %cst_12 = arith.constant 1.500000e+01 : f32
    %27 = vector.broadcast %cst_12 : f32 to vector<128x1xf32>
    %28 = arith.divf %21, %27 : vector<128x1xf32>
    %29 = tpu.iota {dimensions = array<i32: 1>} : vector<1x49xi32>
    %30 = arith.sitofp %29 : vector<1x49xi32> to vector<1x49xf32>
    %cst_13 = arith.constant 0.000000e+00 : f32
    %31 = vector.broadcast %cst_13 : f32 to vector<1x49xf32>
    %cst_14 = arith.constant 0.000000e+00 : f32
    %32 = vector.broadcast %cst_14 : f32 to vector<1x49xf32>
    %cst_15 = arith.constant 0.000000e+00 : f32
    %33 = vector.broadcast %cst_15 : f32 to vector<1x49xf32>
    %34 = arith.subf %30, %33 : vector<1x49xf32>
    %cst_16 = arith.constant 7.000000e+00 : f32
    %35 = vector.broadcast %cst_16 : f32 to vector<1x49xf32>
    %36 = arith.divf %34, %35 : vector<1x49xf32>
    %37 = math.floor %36 : vector<1x49xf32>
    %cst_17 = arith.constant 7.000000e+00 : f32
    %38 = vector.broadcast %cst_17 : f32 to vector<1x49xf32>
    %39 = arith.mulf %37, %38 : vector<1x49xf32>
    %40 = arith.subf %34, %39 : vector<1x49xf32>
    %cst_18 = arith.constant 0.000000e+00 : f32
    %41 = vector.broadcast %cst_18 : f32 to vector<1x49xf32>
    %42 = arith.cmpf oge, %34, %41 : vector<1x49xf32>
    %cst_19 = arith.constant 4.900000e+01 : f32
    %43 = vector.broadcast %cst_19 : f32 to vector<1x49xf32>
    %44 = arith.cmpf olt, %34, %43 : vector<1x49xf32>
    %45 = arith.andi %42, %44 : vector<1x49xi1>
    %cst_20 = arith.constant 7.000000e+00 : f32
    %46 = vector.broadcast %cst_20 : f32 to vector<1x49xf32>
    %47 = arith.divf %40, %46 : vector<1x49xf32>
    %48 = arith.select %45, %47, %31 : vector<1x49xi1>, vector<1x49xf32>
    %cst_21 = arith.constant 7.000000e+00 : f32
    %49 = vector.broadcast %cst_21 : f32 to vector<1x49xf32>
    %50 = arith.divf %37, %49 : vector<1x49xf32>
    %51 = arith.select %45, %50, %32 : vector<1x49xi1>, vector<1x49xf32>
    %52 = vector.broadcast %26 : vector<128x1xf32> to vector<128x49xf32>
    %53 = vector.broadcast %48 : vector<1x49xf32> to vector<128x49xf32>
    %54 = arith.subf %52, %53 : vector<128x49xf32>
    %55 = vector.broadcast %28 : vector<128x1xf32> to vector<128x49xf32>
    %56 = vector.broadcast %51 : vector<1x49xf32> to vector<128x49xf32>
    %57 = arith.subf %55, %56 : vector<128x49xf32>
    %58 = arith.mulf %54, %54 : vector<128x49xf32>
    %59 = arith.mulf %57, %57 : vector<128x49xf32>
    %60 = arith.addf %58, %59 : vector<128x49xf32>
    %cst_22 = arith.constant -1.250000e+01 : f32
    %61 = vector.broadcast %cst_22 : f32 to vector<128x49xf32>
    %62 = arith.mulf %61, %60 : vector<128x49xf32>
    %63 = arith.addf %14, %62 : vector<128x49xf32>
    %cst_23 = arith.constant dense<0xFF800000> : vector<128xf32>
    %64 = vector.multi_reduction <maximumf>, %63, %cst_23 [1] : vector<128x49xf32> to vector<128xf32>
    %65 = vector.shape_cast %64 : vector<128xf32> to vector<128x1xf32>
    %66 = vector.broadcast %65 : vector<128x1xf32> to vector<128x49xf32>
    %67 = arith.subf %63, %66 : vector<128x49xf32>
    %68 = math.exp %67 : vector<128x49xf32>
    %cst_24 = arith.constant dense<0.000000e+00> : vector<128xf32>
    %69 = vector.multi_reduction <add>, %68, %cst_24 [1] : vector<128x49xf32> to vector<128xf32>
    %70 = vector.shape_cast %69 : vector<128xf32> to vector<128x1xf32>
    %71 = tpu.reciprocal %70 {approx = true} : vector<128x1xf32> -> vector<128x1xf32>
    %72 = vector.broadcast %71 : vector<128x1xf32> to vector<128x49xf32>
    %73 = arith.mulf %68, %72 : vector<128x49xf32>
    %74 = arith.truncf %73 : vector<128x49xf32> to vector<128x49xbf16>
    %c0_25 = arith.constant 0 : index
    %c0_26 = arith.constant 0 : index
    %c0_27 = arith.constant 0 : index
    %75 = vector.load %arg5[%c0_25, %c0_26, %c0_27] : memref<1x49x128xbf16, #tpu.memory_space<vmem>>, vector<1x49x128xbf16>
    %76 = vector.shape_cast %75 : vector<1x49x128xbf16> to vector<49x128xbf16>
    %cst_28 = arith.constant dense<0.000000e+00> : vector<128x128xf32>
    %77 = tpu.matmul %74, %76, %cst_28 {dimension_numbers = #tpu.dot_dimension_numbers<[1], [0], [0], [1], [0, 0, 1, 1], [], []>} : vector<128x49xbf16>, vector<49x128xbf16>, vector<128x128xf32> -> vector<128x128xf32>
    %78 = tpu.iota {dimensions = array<i32: 1>} : vector<1x128xi32>
    %c4_i32 = arith.constant 4 : i32
    %79 = vector.broadcast %c4_i32 : i32 to vector<1x128xi32>
    %80 = arith.cmpi eq, %78, %79 : vector<1x128xi32>
    %cst_29 = arith.constant 0.000000e+00 : f32
    %81 = vector.shape_cast %80 : vector<1x128xi1> to vector<1x128xi1>
    %82 = vector.broadcast %81 : vector<1x128xi1> to vector<128x128xi1>
    %83 = vector.shape_cast %26 : vector<128x1xf32> to vector<128x1xf32>
    %84 = vector.broadcast %83 : vector<128x1xf32> to vector<128x128xf32>
    %85 = vector.broadcast %cst_29 : f32 to vector<128x128xf32>
    %86 = arith.select %82, %84, %85 : vector<128x128xi1>, vector<128x128xf32>
    %c5_i32 = arith.constant 5 : i32
    %87 = vector.broadcast %c5_i32 : i32 to vector<1x128xi32>
    %88 = arith.cmpi eq, %78, %87 : vector<1x128xi32>
    %cst_30 = arith.constant 0.000000e+00 : f32
    %89 = vector.shape_cast %88 : vector<1x128xi1> to vector<1x128xi1>
    %90 = vector.broadcast %89 : vector<1x128xi1> to vector<128x128xi1>
    %91 = vector.shape_cast %28 : vector<128x1xf32> to vector<128x1xf32>
    %92 = vector.broadcast %91 : vector<128x1xf32> to vector<128x128xf32>
    %93 = vector.broadcast %cst_30 : f32 to vector<128x128xf32>
    %94 = arith.select %90, %92, %93 : vector<128x128xi1>, vector<128x128xf32>
    %95 = arith.addf %86, %94 : vector<128x128xf32>
    %c0_31 = arith.constant 0 : index
    %c0_32 = arith.constant 0 : index
    %96 = vector.load %arg6[%c0_31, %c0_32] : memref<1x128xf32, #tpu.memory_space<vmem>>, vector<1x128xf32>
    %97 = vector.broadcast %96 : vector<1x128xf32> to vector<128x128xf32>
    %98 = arith.addf %77, %97 : vector<128x128xf32>
    %99 = arith.addf %98, %95 : vector<128x128xf32>
    %c0_33 = arith.constant 0 : index
    %c0_34 = arith.constant 0 : index
    %c0_35 = arith.constant 0 : index
    %100 = vector.load %arg7[%c0_33, %c0_34, %c0_35] : memref<1x128x128xf32, #tpu.memory_space<vmem>>, vector<1x128x128xf32>
    %101 = vector.shape_cast %100 : vector<1x128x128xf32> to vector<128x128xf32>
    %102 = vector.shape_cast %99 : vector<128x128xf32> to vector<1x128x128xf32>
    tpu.vector_store %arg7[%c0_33, %c0_34, %c0_35], %102 {strides = array<i32>} : memref<1x128x128xf32, #tpu.memory_space<vmem>>, vector<1x128x128xf32>,
    return
  }
  func.func @transform_0(%arg0: i32, %arg1: i32) -> (i32, i32, i32) {
    %c0_i32 = arith.constant 0 : i32
    %c0_i32_0 = arith.constant 0 : i32
    return %arg0, %arg1, %c0_i32 : i32, i32, i32
  }
  func.func @transform_1(%arg0: i32, %arg1: i32) -> (i32, i32) {
    %c0_i32 = arith.constant 0 : i32
    %c0_i32_0 = arith.constant 0 : i32
    %c0_i32_1 = arith.constant 0 : i32
    return %c0_i32, %c0_i32_0 : i32, i32
  }
  func.func @transform_2(%arg0: i32, %arg1: i32) -> (i32, i32, i32) {
    %c0_i32 = arith.constant 0 : i32
    %c0_i32_0 = arith.constant 0 : i32
    %c0_i32_1 = arith.constant 0 : i32
    return %arg0, %c0_i32, %c0_i32_0 : i32, i32, i32
  }
  func.func @transform_3(%arg0: i32, %arg1: i32) -> (i32, i32, i32) {
    %c0_i32 = arith.constant 0 : i32
    %c0_i32_0 = arith.constant 0 : i32
    %c0_i32_1 = arith.constant 0 : i32
    return %arg0, %c0_i32, %c0_i32_0 : i32, i32, i32
  }
  func.func @transform_4(%arg0: i32, %arg1: i32) -> (i32, i32) {
    %c0_i32 = arith.constant 0 : i32
    %c0_i32_0 = arith.constant 0 : i32
    %c0_i32_1 = arith.constant 0 : i32
    return %c0_i32, %c0_i32_0 : i32, i32
  }
  func.func @transform_5(%arg0: i32, %arg1: i32) -> (i32, i32, i32) {
    %c0_i32 = arith.constant 0 : i32
    %c0_i32_0 = arith.constant 0 : i32
    return %arg0, %arg1, %c0_i32 : i32, i32, i32
  }
}

</mosaic_0001>

<llo_original>
// kernel: self_attention_block.2
$region0: #{self_attention_block.2}
  #allocation0 [shape = 'u32[]', space=smem, size = 0x4, offset = 0x4, fixed_abs, tag = 'smem constant byte address 0x4 - core index']
  #allocation1 [shape = 'u32[72,128]{1,0:T(1,128)}', space=vmem, size = 0x9000, scoped, tag = 'internal scratch']
  %s0 = inlined_call_operand.vmem [shape: f32[450,4], index: 0, kind: input, shape index: {}]
  %s1 = inlined_call_operand.vmem [shape: f32[4,16], index: 1, kind: input, shape index: {}]
  %s2 = inlined_call_operand.vmem [shape: f32[1,16], index: 2, kind: input, shape index: {}]
  %s3 = inlined_call_operand.vmem [shape: f32[450,16], index: 3, kind: output, shape index: {0}]
  %s4 = inlined_call_operand.vmem [shape: f32[1,16], index: 4, kind: output, shape index: {1}]
  %5 = xla_tuple %s3, %s4
  %s6 = sld [smem:[#allocation0]]
  $region105: #{self_attention_block.2} parent=0
    _
  %s8 = ssub.s32 1, %s6
  %s9 = scalar_select 0, %s8, %s6
  $region1: #{self_attention_block.2} parent=0
    #allocation2 [shape = 'u8[131072]{0}', space=vmem, size = 0x20000, scoped, tag = 'output window, operand 0']
    loop: start=0, step=1, limit=6
    $region2: #{self_attention_block.2} parent=1 // loop_pre_header
      _
    $region3: #{self_attention_block.2} parent=1 // loop_header
      %s11 = sphi 0, %s15
      %p12 = scmp.ge.s32.totalorder %s11, 6
      %s21 = sphi 0, %s23
      %s24 = sphi 0, %s21
      %s25 = sphi 0, %s24
      %s41 = sphi 0, %s25
      %s45 = sphi 0, %s45
      %s47 = sphi 0, %s45
      %s48 = sphi 0, %s47
      %s62 = sphi 0, %s48
      %s66 = sphi 0, %s66
      %s68 = sphi 0, %s66
      %s69 = sphi 0, %s68
      %s83 = sphi 0, %s69
      %s89 = sphi 0, %s91
      %s92 = sphi 0, %s89
      %s93 = sphi 0, %s92
      %s109 = sphi 0, %s93
      %s113 = sphi 0, %s113
      %s115 = sphi 0, %s113
      %s116 = sphi 0, %s115
      %s130 = sphi 0, %s116
    $region4: #{self_attention_block.2} parent=1 // loop_header_branch
      %14 = sbr.rel (%p12) target = $region8
    $region5: #{self_attention_block.2} parent=1 // loop_body
      %s16 = ssub.s32 %s11, 1
      %s17 = ssub.s32 %s11, 2
      %s18 = sadd.s32 %s11, 1
      %s19 = ssub.s32 %s11, %s18
      %p20 = scmp.eq.s32.totalorder %s19, 0
      %s22 = sadd.s32 %s21, 1
      %s23 = scalar_select %p20, %s21, %s22
      %p26 = pneg %p20
      %p27 = scmp.eq.s32.totalorder %s11, 3
      %p28 = por %p26, %p27
      %p29 = scmp.ne.s32.totalorder %s21, %s24
      %p30 = scmp.eq.s32.totalorder %s11, 0
      %p31 = por %p29, %p30
      %p32 = scmp.ne.s32.totalorder %s21, %s24
      %p33 = scmp.eq.s32.totalorder %s16, 3
      %p34 = por %p32, %p33
      %p35 = scmp.ne.s32.totalorder %s24, %s25
      %p36 = scmp.eq.s32.totalorder %s16, 0
      %p37 = por %p35, %p36
      %p38 = scmp.ne.s32.totalorder %s24, %s25
      %p39 = scmp.eq.s32.totalorder %s17, 3
      %p40 = por %p38, %p39
      %p42 = scmp.ne.s32.totalorder %s25, %s41
      %p43 = scmp.eq.s32.totalorder %s17, 0
      %p44 = por %p42, %p43
      %s46 = sadd.s32 %s45, 1
      %p49 = scmp.eq.s32.totalorder %s11, 3
      %p50 = scmp.ne.s32.totalorder %s45, %s47
      %p51 = scmp.eq.s32.totalorder %s11, 0
      %p52 = por %p50, %p51
      %p53 = scmp.ne.s32.totalorder %s45, %s47
      %p54 = scmp.eq.s32.totalorder %s16, 3
      %p55 = por %p53, %p54
      %p56 = scmp.ne.s32.totalorder %s47, %s48
      %p57 = scmp.eq.s32.totalorder %s16, 0
      %p58 = por %p56, %p57
      %p59 = scmp.ne.s32.totalorder %s47, %s48
      %p60 = scmp.eq.s32.totalorder %s17, 3
      %p61 = por %p59, %p60
      %p63 = scmp.ne.s32.totalorder %s48, %s62
      %p64 = scmp.eq.s32.totalorder %s17, 0
      %p65 = por %p63, %p64
      %s67 = sadd.s32 %s66, 1
      %p70 = scmp.eq.s32.totalorder %s11, 3
      %p71 = scmp.ne.s32.totalorder %s66, %s68
      %p72 = scmp.eq.s32.totalorder %s11, 0
      %p73 = por %p71, %p72
      %p74 = scmp.ne.s32.totalorder %s66, %s68
      %p75 = scmp.eq.s32.totalorder %s16, 3
      %p76 = por %p74, %p75
      %p77 = scmp.ne.s32.totalorder %s68, %s69
      %p78 = scmp.eq.s32.totalorder %s16, 0
      %p79 = por %p77, %p78
      %p80 = scmp.ne.s32.totalorder %s68, %s69
      %p81 = scmp.eq.s32.totalorder %s17, 3
      %p82 = por %p80, %p81
      %p84 = scmp.ne.s32.totalorder %s69, %s83
      %p85 = scmp.eq.s32.totalorder %s17, 0
      %p86 = por %p84, %p85
      %s87 = ssub.s32 %s11, %s18
      %p88 = scmp.eq.s32.totalorder %s87, 0
      %s90 = sadd.s32 %s89, 1
      %s91 = scalar_select %p88, %s89, %s90
      %p94 = pneg %p88
      %p95 = scmp.eq.s32.totalorder %s11, 3
      %p96 = por %p94, %p95
      %p97 = scmp.ne.s32.totalorder %s89, %s92
      %p98 = scmp.eq.s32.totalorder %s11, 0
      %p99 = por %p97, %p98
      %p100 = scmp.ne.s32.totalorder %s89, %s92
      %p101 = scmp.eq.s32.totalorder %s16, 3
      %p102 = por %p100, %p101
      %p103 = scmp.ne.s32.totalorder %s92, %s93
      %p104 = scmp.eq.s32.totalorder %s16, 0
      %p105 = por %p103, %p104
      %p106 = scmp.ne.s32.totalorder %s92, %s93
      %p107 = scmp.eq.s32.totalorder %s17, 3
      %p108 = por %p106, %p107
      %p110 = scmp.ne.s32.totalorder %s93, %s109
      %p111 = scmp.eq.s32.totalorder %s17, 0
      %p112 = por %p110, %p111
      %s114 = sadd.s32 %s113, 1
      %p117 = scmp.eq.s32.totalorder %s11, 3
      %p118 = scmp.ne.s32.totalorder %s113, %s115
      %p119 = scmp.eq.s32.totalorder %s11, 0
      %p120 = por %p118, %p119
      %p121 = scmp.ne.s32.totalorder %s113, %s115
      %p122 = scmp.eq.s32.totalorder %s16, 3
      %p123 = por %p121, %p122
      %p124 = scmp.ne.s32.totalorder %s115, %s116
      %p125 = scmp.eq.s32.totalorder %s16, 0
      %p126 = por %p124, %p125
      %p127 = scmp.ne.s32.totalorder %s115, %s116
      %p128 = scmp.eq.s32.totalorder %s17, 3
      %p129 = por %p127, %p128
      %p131 = scmp.ne.s32.totalorder %s116, %s130
      %p132 = scmp.eq.s32.totalorder %s17, 0
      %p133 = por %p131, %p132
      %p134 = scmp.le.s32.totalorder 1, %s11
      %p135 = scmp.lt.s32.totalorder %s11, 5
      %p136 = pnand %p134, %p135
      %p137 = pneg %p136
      // Predicated region
      $region9: #{self_attention_block.2} parent=5 // pred_check
        _
      $region10: #{self_attention_block.2} parent=5 // pred_check_branch
        %139 = sbr.rel (%p136) target = $region12
      $region11: #{self_attention_block.2} parent=5 // pred_region
        %s140 = ssub.s32 %s11, 1
        // Predicated region
        $region13: #{self_attention_block.2} parent=11 // pred_check
          %p141 = pneg %p58
        $region14: #{self_attention_block.2} parent=11 // pred_check_branch
          %143 = sbr.rel (%p141) target = $region16
        $region15: #{self_attention_block.2} parent=11 // pred_region
          _
        $region16: #{self_attention_block.2} parent=11 // pred_fallthru
          _
        // Predicated region
        $region17: #{self_attention_block.2} parent=11 // pred_check
          %p144 = pneg %p79
        $region18: #{self_attention_block.2} parent=11 // pred_check_branch
          %146 = sbr.rel (%p144) target = $region20
        $region19: #{self_attention_block.2} parent=11 // pred_region
          _
        $region20: #{self_attention_block.2} parent=11 // pred_fallthru
          _
      $region12: #{self_attention_block.2} parent=5 // pred_fallthru
        _
      %p147 = scmp.lt.s32.totalorder %s11, 4
      // Predicated region
      $region21: #{self_attention_block.2} parent=5 // pred_check
        %p148 = pneg %p147
      $region22: #{self_attention_block.2} parent=5 // pred_check_branch
        %150 = sbr.rel (%p148) target = $region24
      $region23: #{self_attention_block.2} parent=5 // pred_region
        // Predicated region
        $region25: #{self_attention_block.2} parent=23 // pred_check
          %p151 = pneg %p31
        $region26: #{self_attention_block.2} parent=23 // pred_check_branch
          %153 = sbr.rel (%p151) target = $region28
        $region27: #{self_attention_block.2} parent=23 // pred_region
          %s154 = smul.u32 16, %s11
          %s155 = ssub.s32 57, %s154
          %p156 = scmp.lt.s32.totalorder %s155, 16
          %s157 = scalar_select %p156, %s155, 16
          %s158 = smul.u32 8, %s157
          %p159 = scmp.lt.s32.totalorder %s154, 56
          %s160 = scalar_select %p159, %s154, 56
          %s161 = smul.addr %s160, 8
          %s162 = scalar_lea.vmem %s0, %s161
          %s163 = smul.u32 16, %s11
          %s164 = ssub.s32 57, %s163
          %p165 = scmp.lt.s32.totalorder %s164, 16
          %s166 = scalar_select %p165, %s164, 16
          %s167 = smul.u32 8, %s166
        $region28: #{self_attention_block.2} parent=23 // pred_fallthru
          _
      $region24: #{self_attention_block.2} parent=5 // pred_fallthru
        _
      %p168 = scmp.le.s32.totalorder 1, %s11
      %p169 = scmp.lt.s32.totalorder %s11, 5
      %p170 = pnand %p168, %p169
      %p171 = pneg %p170
      // Predicated region
      $region29: #{self_attention_block.2} parent=5 // pred_check
        _
      $region30: #{self_attention_block.2} parent=5 // pred_check_branch
        %173 = sbr.rel (%p170) target = $region32
      $region31: #{self_attention_block.2} parent=5 // pred_region
        %s174 = ssub.s32 %s11, 1
        %s175 = smul.u32 16, %s16
        %s176 = ssub.s32 57, %s175
        %p177 = scmp.lt.s32.totalorder %s176, 16
        %s178 = scalar_select %p177, %s176, 16
        %s179 = smul.u32 8, %s178
        %p180 = scmp.lt.s32.totalorder %s175, 56
        %s181 = scalar_select %p180, %s175, 56
        %s182 = smul.addr %s181, 8
        %s183 = scalar_lea.vmem %s0, %s182
        %p184 = pneg %p37
        %p185 = pneg %p34
        %p186 = pneg %p58
        %p187 = pneg %p55
        %p188 = pneg %p79
        %p189 = pneg %p76
        %p190 = pneg %p105
        %p191 = pneg %p102
        %s192 = sand.u32 %s92, 1
        %s193 = sand.u32 %s92, 1
        %s194 = smul.addr %s193, 128
        %s195 = scalar_lea.vmem [#allocation2], %s194
        %p196 = pneg %p126
        %p197 = pneg %p123
        %s198 = smul.u32 16, %s16
        %s199 = ssub.s32 57, %s198
        %p200 = scmp.lt.s32.totalorder %s199, 16
        %s201 = scalar_select %p200, %s199, 16
        %s202 = smul.u32 8, %s201
        %p203 = scmp.lt.s32.totalorder %s198, 56
        %s204 = scalar_select %p203, %s198, 56
        %s205 = smul.addr %s204, 8
        %s206 = scalar_lea.vmem %s0, %s205
        %s207 = smul.u32 16, %s16
        %s208 = ssub.s32 57, %s207
        %p209 = scmp.lt.s32.totalorder %s208, 16
        %s210 = scalar_select %p209, %s208, 16
        %s211 = smul.u32 8, %s210
        %s212 = smul.u32 16, %s16
        %s213 = ssub.s32 57, %s212
        %p214 = scmp.lt.s32.totalorder %s213, 16
        %s215 = scalar_select %p214, %s213, 16
        %s216 = smul.u32 8, %s215
        %p217 = scmp.eq.s32.totalorder %s16, 0
        // Predicated region
        $region33: #{self_attention_block.2} parent=31 // pred_check
          %p218 = pneg %p217
        $region34: #{self_attention_block.2} parent=31 // pred_check_branch
          %220 = sbr.rel (%p218) target = $region36
        $region35: #{self_attention_block.2} parent=31 // pred_region
          %vm221 = vcmask 122880
          %222 = vst.msk [vmem:[%s4] sm:$0x1] %vm221, 0.0
        $region36: #{self_attention_block.2} parent=31 // pred_fallthru
          _
        %v223 = vld [vmem:[%s206] sm:$0xff]
        %v224 = vld [vmem:[%s206 + $0x8] sm:$0xff]
        %v225 = vld [vmem:[%s206 + $0x10] sm:$0xff]
        %v226 = vld [vmem:[%s206 + $0x18] sm:$0xff]
        %v227 = vld [vmem:[%s206 + $0x20] sm:$0xff]
        %v228 = vld [vmem:[%s206 + $0x28] sm:$0xff]
        %v229 = vld [vmem:[%s206 + $0x30] sm:$0xff]
        %v230 = vld [vmem:[%s206 + $0x38] sm:$0xff]
        %v231 = vld [vmem:[%s206 + $0x40] sm:$0xff]
        %v232 = vld [vmem:[%s206 + $0x48] sm:$0xff]
        %v233 = vld [vmem:[%s206 + $0x50] sm:$0xff]
        %v234 = vld [vmem:[%s206 + $0x58] sm:$0xff]
        %v235 = vld [vmem:[%s206 + $0x60] sm:$0xff]
        %v236 = vld [vmem:[%s206 + $0x68] sm:$0xff]
        %v237 = vld [vmem:[%s206 + $0x70] sm:$0xff]
        %v238 = vld [vmem:[%s206 + $0x78] sm:$0xff]
        %v239 = vld [vmem:[%s1] sm:$0xf]
        %v240 = vld [vmem:[%s2] sm:$0x1]
        %v242 = vperm.slane %v240, 0
        %vm244 = vcmask 31744
        %v246 = vsel %vm244, %v223, 0
        %v249 = vsel %vm244, %v224, 0
        %v252 = vsel %vm244, %v225, 0
        %v255 = vsel %vm244, %v226, 0
        %v258 = vsel %vm244, %v227, 0
        %v261 = vsel %vm244, %v228, 0
        %v264 = vsel %vm244, %v229, 0
        %v267 = vsel %vm244, %v230, 0
        %v270 = vsel %vm244, %v231, 0
        %v273 = vsel %vm244, %v232, 0
        %v276 = vsel %vm244, %v233, 0
        %v279 = vsel %vm244, %v234, 0
        %v282 = vsel %vm244, %v235, 0
        %v285 = vsel %vm244, %v236, 0
        %v288 = vsel %vm244, %v237, 0
        %v291 = vsel %vm244, %v238, 0
        %vm293 = vcmask 1043456
        %v295 = vsel %vm293, %v239, 0
        %297 = vmatpush.msra.mxu0 0.0
        %298 = vmatpush.msra.mxu0 0.0
        %299 = vmatpush.msra.mxu0 0.0
        %300 = vmatpush.msra.mxu0 0.0
        %301 = vmatpush.msra.mxu0 0.0
        %302 = vmatpush.msra.mxu0 0.0
        %303 = vmatpush.msra.mxu0 0.0
        %304 = vmatpush.msra.mxu0 0.0
        %305 = vmatpush.msra.mxu0 0.0
        %306 = vmatpush.msra.mxu0 0.0
        %307 = vmatpush.msra.mxu0 0.0
        %308 = vmatpush.msra.mxu0 0.0
        %309 = vmatpush.msra.mxu0 0.0
        %310 = vmatpush.msra.mxu0 0.0
        %311 = vmatpush.msra.mxu0 0.0
        %312 = vmatpush.msra.mxu0 %v295
        %313 = vmatmul.f32.gmra.mxu0 %v246
        %v314 = vpop.f32.mrf.mxu0
        %v315 = vadd.f32 %v242, %v314
        %316 = vmatmul.f32.gmra.mxu0 %v249
        %v317 = vpop.f32.mrf.mxu0
        %v318 = vadd.f32 %v242, %v317
        %319 = vmatmul.f32.gmra.mxu0 %v252
        %v320 = vpop.f32.mrf.mxu0
        %v321 = vadd.f32 %v242, %v320
        %322 = vmatmul.f32.gmra.mxu0 %v255
        %v323 = vpop.f32.mrf.mxu0
        %v324 = vadd.f32 %v242, %v323
        %325 = vmatmul.f32.gmra.mxu0 %v258
        %v326 = vpop.f32.mrf.mxu0
        %v327 = vadd.f32 %v242, %v326
        %328 = vmatmul.f32.gmra.mxu0 %v261
        %v329 = vpop.f32.mrf.mxu0
        %v330 = vadd.f32 %v242, %v329
        %331 = vmatmul.f32.gmra.mxu0 %v264
        %v332 = vpop.f32.mrf.mxu0
        %v333 = vadd.f32 %v242, %v332
        %334 = vmatmul.f32.gmra.mxu0 %v267
        %v335 = vpop.f32.mrf.mxu0
        %v336 = vadd.f32 %v242, %v335
        %337 = vmatmul.f32.gmra.mxu0 %v270
        %v338 = vpop.f32.mrf.mxu0
        %v339 = vadd.f32 %v242, %v338
        %340 = vmatmul.f32.gmra.mxu0 %v273
        %v341 = vpop.f32.mrf.mxu0
        %v342 = vadd.f32 %v242, %v341
        %343 = vmatmul.f32.gmra.mxu0 %v276
        %v344 = vpop.f32.mrf.mxu0
        %v345 = vadd.f32 %v242, %v344
        %346 = vmatmul.f32.gmra.mxu0 %v279
        %v347 = vpop.f32.mrf.mxu0
        %v348 = vadd.f32 %v242, %v347
        %349 = vmatmul.f32.gmra.mxu0 %v282
        %v350 = vpop.f32.mrf.mxu0
        %v351 = vadd.f32 %v242, %v350
        %352 = vmatmul.f32.gmra.mxu0 %v285
        %v353 = vpop.f32.mrf.mxu0
        %v354 = vadd.f32 %v242, %v353
        %355 = vmatmul.f32.gmra.mxu0 %v288
        %v356 = vpop.f32.mrf.mxu0
        %v357 = vadd.f32 %v242, %v356
        %358 = vmatmul.f32.gmra.mxu0 %v291
        %v359 = vpop.f32.mrf.mxu0
        %v360 = vadd.f32 %v242, %v359
        %361 = vdwg.mxu0
        %vm362 = vcmask 130048
        %363 = vst.msk [vmem:[%s195] sm:$0xff] %vm362, %v315
        %364 = vst.msk [vmem:[%s195 + $0x8] sm:$0xff] %vm362, %v318
        %365 = vst.msk [vmem:[%s195 + $0x10] sm:$0xff] %vm362, %v321
        %366 = vst.msk [vmem:[%s195 + $0x18] sm:$0xff] %vm362, %v324
        %367 = vst.msk [vmem:[%s195 + $0x20] sm:$0xff] %vm362, %v327
        %368 = vst.msk [vmem:[%s195 + $0x28] sm:$0xff] %vm362, %v330
        %369 = vst.msk [vmem:[%s195 + $0x30] sm:$0xff] %vm362, %v333
        %370 = vst.msk [vmem:[%s195 + $0x38] sm:$0xff] %vm362, %v336
        %371 = vst.msk [vmem:[%s195 + $0x40] sm:$0xff] %vm362, %v339
        %372 = vst.msk [vmem:[%s195 + $0x48] sm:$0xff] %vm362, %v342
        %373 = vst.msk [vmem:[%s195 + $0x50] sm:$0xff] %vm362, %v345
        %374 = vst.msk [vmem:[%s195 + $0x58] sm:$0xff] %vm362, %v348
        %375 = vst.msk [vmem:[%s195 + $0x60] sm:$0xff] %vm362, %v351
        %376 = vst.msk [vmem:[%s195 + $0x68] sm:$0xff] %vm362, %v354
        %377 = vst.msk [vmem:[%s195 + $0x70] sm:$0xff] %vm362, %v357
        %378 = vst.msk [vmem:[%s195 + $0x78] sm:$0xff] %vm362, %v360
        %s379 = smul.u32 %s16, 128
        %v380 = vlaneseq
        %v381 = vshrl.u32 %v380, 7
        %v382 = vadd.s32 %v381, 8
        %v383 = vadd.s32 %v381, 16
        %v384 = vadd.s32 %v381, 24
        %v385 = vadd.s32 %v381, 32
        %v386 = vadd.s32 %v381, 40
        %v387 = vadd.s32 %v381, 48
        %v388 = vadd.s32 %v381, 56
        %v389 = vadd.s32 %v381, 64
        %v390 = vadd.s32 %v381, 72
        %v391 = vadd.s32 %v381, 80
        %v392 = vadd.s32 %v381, 88
        %v393 = vadd.s32 %v381, 96
        %v394 = vadd.s32 %v381, 104
        %v395 = vadd.s32 %v381, 112
        %v396 = vadd.s32 %v381, 120
        %v397 = vstv %s379
        %v398 = vadd.s32 %v397, %v381
        %v399 = vadd.s32 %v397, %v382
        %v400 = vadd.s32 %v397, %v383
        %v401 = vadd.s32 %v397, %v384
        %v402 = vadd.s32 %v397, %v385
        %v403 = vadd.s32 %v397, %v386
        %v404 = vadd.s32 %v397, %v387
        %v405 = vadd.s32 %v397, %v388
        %v406 = vadd.s32 %v397, %v389
        %v407 = vadd.s32 %v397, %v390
        %v408 = vadd.s32 %v397, %v391
        %v409 = vadd.s32 %v397, %v392
        %v410 = vadd.s32 %v397, %v393
        %v411 = vadd.s32 %v397, %v394
        %v412 = vadd.s32 %v397, %v395
        %v413 = vadd.s32 %v397, %v396
        %vm414 = vcmp.lt.s32.totalorder %v398, 450
        %vm415 = vcmp.lt.s32.totalorder %v399, 450
        %vm416 = vcmp.lt.s32.totalorder %v400, 450
        %vm417 = vcmp.lt.s32.totalorder %v401, 450
        %vm418 = vcmp.lt.s32.totalorder %v402, 450
        %vm419 = vcmp.lt.s32.totalorder %v403, 450
        %vm420 = vcmp.lt.s32.totalorder %v404, 450
        %vm421 = vcmp.lt.s32.totalorder %v405, 450
        %vm422 = vcmp.lt.s32.totalorder %v406, 450
        %vm423 = vcmp.lt.s32.totalorder %v407, 450
        %vm424 = vcmp.lt.s32.totalorder %v408, 450
        %vm425 = vcmp.lt.s32.totalorder %v409, 450
        %vm426 = vcmp.lt.s32.totalorder %v410, 450
        %vm427 = vcmp.lt.s32.totalorder %v411, 450
        %vm428 = vcmp.lt.s32.totalorder %v412, 450
        %vm429 = vcmp.lt.s32.totalorder %v413, 450
        %v430 = vsel %vm414, 1, 0
        %v431 = vsel %vm415, 1, 0
        %v432 = vsel %vm416, 1, 0
        %v433 = vsel %vm417, 1, 0
        %v434 = vsel %vm418, 1, 0
        %v435 = vsel %vm419, 1, 0
        %v436 = vsel %vm420, 1, 0
        %v437 = vsel %vm421, 1, 0
        %v438 = vsel %vm422, 1, 0
        %v439 = vsel %vm423, 1, 0
        %v440 = vsel %vm424, 1, 0
        %v441 = vsel %vm425, 1, 0
        %v442 = vsel %vm426, 1, 0
        %v443 = vsel %vm427, 1, 0
        %v444 = vsel %vm428, 1, 0
        %v445 = vsel %vm429, 1, 0
        %vm446 = vcmp.eq.s32.totalorder %v430, 1
        %vm447 = vcmp.eq.s32.totalorder %v431, 1
        %vm448 = vcmp.eq.s32.totalorder %v432, 1
        %vm449 = vcmp.eq.s32.totalorder %v433, 1
        %vm450 = vcmp.eq.s32.totalorder %v434, 1
        %vm451 = vcmp.eq.s32.totalorder %v435, 1
        %vm452 = vcmp.eq.s32.totalorder %v436, 1
        %vm453 = vcmp.eq.s32.totalorder %v437, 1
        %vm454 = vcmp.eq.s32.totalorder %v438, 1
        %vm455 = vcmp.eq.s32.totalorder %v439, 1
        %vm456 = vcmp.eq.s32.totalorder %v440, 1
        %vm457 = vcmp.eq.s32.totalorder %v441, 1
        %vm458 = vcmp.eq.s32.totalorder %v442, 1
        %vm459 = vcmp.eq.s32.totalorder %v443, 1
        %vm460 = vcmp.eq.s32.totalorder %v444, 1
        %vm461 = vcmp.eq.s32.totalorder %v445, 1
        %v462 = vsel %vm446, %v315, 0.0
        %v463 = vsel %vm447, %v318, 0.0
        %v464 = vsel %vm448, %v321, 0.0
        %v465 = vsel %vm449, %v324, 0.0
        %v466 = vsel %vm450, %v327, 0.0
        %v467 = vsel %vm451, %v330, 0.0
        %v468 = vsel %vm452, %v333, 0.0
        %v469 = vsel %vm453, %v336, 0.0
        %v470 = vsel %vm454, %v339, 0.0
        %v471 = vsel %vm455, %v342, 0.0
        %v472 = vsel %vm456, %v345, 0.0
        %v473 = vsel %vm457, %v348, 0.0
        %v474 = vsel %vm458, %v351, 0.0
        %v475 = vsel %vm459, %v354, 0.0
        %v476 = vsel %vm460, %v357, 0.0
        %v477 = vsel %vm461, %v360, 0.0
        %vm478 = vcmask 64512
        %v479 = vsel %vm478, %v462, 0.0
        %v480 = vsel %vm478, %v463, 0.0
        %v481 = vadd.f32 %v479, %v480
        %v482 = vsel %vm478, %v464, 0.0
        %v483 = vadd.f32 %v481, %v482
        %v484 = vsel %vm478, %v465, 0.0
        %v485 = vadd.f32 %v483, %v484
        %v486 = vsel %vm478, %v466, 0.0
        %v487 = vadd.f32 %v485, %v486
        %v488 = vsel %vm478, %v467, 0.0
        %v489 = vadd.f32 %v487, %v488
        %v490 = vsel %vm478, %v468, 0.0
        %v491 = vadd.f32 %v489, %v490
        %v492 = vsel %vm478, %v469, 0.0
        %v493 = vadd.f32 %v491, %v492
        %v494 = vsel %vm478, %v470, 0.0
        %v495 = vadd.f32 %v493, %v494
        %v496 = vsel %vm478, %v471, 0.0
        %v497 = vadd.f32 %v495, %v496
        %v498 = vsel %vm478, %v472, 0.0
        %v499 = vadd.f32 %v497, %v498
        %v500 = vsel %vm478, %v473, 0.0
        %v501 = vadd.f32 %v499, %v500
        %v502 = vsel %vm478, %v474, 0.0
        %v503 = vadd.f32 %v501, %v502
        %v504 = vsel %vm478, %v475, 0.0
        %v505 = vadd.f32 %v503, %v504
        %v506 = vsel %vm478, %v476, 0.0
        %v507 = vadd.f32 %v505, %v506
        %v508 = vsel %vm478, %v477, 0.0
        %v509 = vadd.f32 %v507, %v508
        %v510 = vrot.slane %v509, 4
        %v511 = vadd.f32 %v509, %v510
        %v512 = vrot.slane %v511, 2
        %v513 = vadd.f32 %v511, %v512
        %v514 = vrot.slane %v513, 1
        %v515 = vadd.f32 %v513, %v514
        %v516 = vmul.f32 %v462, %v462
        %v517 = vmul.f32 %v463, %v463
        %v518 = vmul.f32 %v464, %v464
        %v519 = vmul.f32 %v465, %v465
        %v520 = vmul.f32 %v466, %v466
        %v521 = vmul.f32 %v467, %v467
        %v522 = vmul.f32 %v468, %v468
        %v523 = vmul.f32 %v469, %v469
        %v524 = vmul.f32 %v470, %v470
        %v525 = vmul.f32 %v471, %v471
        %v526 = vmul.f32 %v472, %v472
        %v527 = vmul.f32 %v473, %v473
        %v528 = vmul.f32 %v474, %v474
        %v529 = vmul.f32 %v475, %v475
        %v530 = vmul.f32 %v476, %v476
        %v531 = vmul.f32 %v477, %v477
        %v532 = vsel %vm478, %v516, 0.0
        %v533 = vsel %vm478, %v517, 0.0
        %v534 = vadd.f32 %v532, %v533
        %v535 = vsel %vm478, %v518, 0.0
        %v536 = vadd.f32 %v534, %v535
        %v537 = vsel %vm478, %v519, 0.0
        %v538 = vadd.f32 %v536, %v537
        %v539 = vsel %vm478, %v520, 0.0
        %v540 = vadd.f32 %v538, %v539
        %v541 = vsel %vm478, %v521, 0.0
        %v542 = vadd.f32 %v540, %v541
        %v543 = vsel %vm478, %v522, 0.0
        %v544 = vadd.f32 %v542, %v543
        %v545 = vsel %vm478, %v523, 0.0
        %v546 = vadd.f32 %v544, %v545
        %v547 = vsel %vm478, %v524, 0.0
        %v548 = vadd.f32 %v546, %v547
        %v549 = vsel %vm478, %v525, 0.0
        %v550 = vadd.f32 %v548, %v549
        %v551 = vsel %vm478, %v526, 0.0
        %v552 = vadd.f32 %v550, %v551
        %v553 = vsel %vm478, %v527, 0.0
        %v554 = vadd.f32 %v552, %v553
        %v555 = vsel %vm478, %v528, 0.0
        %v556 = vadd.f32 %v554, %v555
        %v557 = vsel %vm478, %v529, 0.0
        %v558 = vadd.f32 %v556, %v557
        %v559 = vsel %vm478, %v530, 0.0
        %v560 = vadd.f32 %v558, %v559
        %v561 = vsel %vm478, %v531, 0.0
        %v562 = vadd.f32 %v560, %v561
        %v563 = vrot.slane %v562, 4
        %v564 = vadd.f32 %v562, %v563
        %v565 = vrot.slane %v564, 2
        %v566 = vadd.f32 %v564, %v565
        %v567 = vrot.slane %v566, 1
        %v568 = vadd.f32 %v566, %v567
        %v569 = vld [vmem:[%s4] sm:$0x1]
        %571 = vrot.lane.b32.xlu0 %v568, 8
        %v572 = vpop.permute.xlu0 %571
        %v574 = vsel %vm478, %v515, %v572
        %v575 = vadd.f32 %v569, %v574
        %vm576 = vcmask 122880
        %577 = vst.msk [vmem:[%s4] sm:$0x1] %vm576, %v575
        %s578 = sand.u32 %s92, 1
        %s579 = sand.u32 %s92, 1
        %s580 = smul.addr %s579, 128
        %s581 = scalar_lea.vmem [#allocation2], %s580
        // Predicated region
        $region37: #{self_attention_block.2} parent=31 // pred_check
          %p582 = pneg %p102
        $region38: #{self_attention_block.2} parent=31 // pred_check_branch
          %584 = sbr.rel (%p582) target = $region40
        $region39: #{self_attention_block.2} parent=31 // pred_region
          %s585 = smul.u32 16, %s16
          %s586 = ssub.s32 57, %s585
          %p587 = scmp.lt.s32.totalorder %s586, 16
          %s588 = scalar_select %p587, %s586, 16
          %s589 = smul.u32 8, %s588
          %p590 = scmp.ne.s32.totalorder 0, %s589
          %s591 = smul.addr %s585, 8
          %s592 = scalar_lea.vmem %s3, %s591
          // Predicated region
          $region41: #{self_attention_block.2} parent=39 // pred_check
            %p593 = pneg %p590
          $region42: #{self_attention_block.2} parent=39 // pred_check_branch
            %595 = sbr.rel (%p593) target = $region44
          $region43: #{self_attention_block.2} parent=39 // pred_region
            // Predicated region
            $region45: #{self_attention_block.2} parent=43 // pred_check
              _
            $region46: #{self_attention_block.2} parent=43 // pred_check_branch
              %597 = sbr.rel (0) target = $region48
            $region47: #{self_attention_block.2} parent=43 // pred_region
              // Predicated region
              $region67: #{self_attention_block.2} parent=47 // pred_check
                _
              $region68: #{self_attention_block.2} parent=47 // pred_check_branch
                %677 = sbr.rel (0) target = $region70
              $region69: #{self_attention_block.2} parent=47 // pred_region
                %s678 = sshrl.u32 %s588, 4
                // While loop
                $region71: #{self_attention_block.2} parent=69 // loop_pre_header
                  _
                $region72: #{self_attention_block.2} parent=69 // loop_header
                  %s680 = sphi 0, %s682
                  %p681 = scmp.ge.s32.totalorder %s680, %s678
                  %s685 = sphi 0, %s722
                  %s686 = sphi %s581, %s725
                  %s687 = sphi %s592, %s726
                $region73: #{self_attention_block.2} parent=69 // loop_header_branch
                  %684 = sbr.rel (%p681) target = $region77
                $region74: #{self_attention_block.2} parent=69 // loop_body
                  %v688 = vld [vmem:[%s686] sm:$0xff]
                  %689 = vst [vmem:[%s687] sm:$0xff] %v688
                  %v690 = vld [vmem:[%s686 + $0x8] sm:$0xff]
                  %691 = vst [vmem:[%s687 + $0x8] sm:$0xff] %v690
                  %v692 = vld [vmem:[%s686 + $0x10] sm:$0xff]
                  %693 = vst [vmem:[%s687 + $0x10] sm:$0xff] %v692
                  %v694 = vld [vmem:[%s686 + $0x18] sm:$0xff]
                  %695 = vst [vmem:[%s687 + $0x18] sm:$0xff] %v694
                  %v696 = vld [vmem:[%s686 + $0x20] sm:$0xff]
                  %697 = vst [vmem:[%s687 + $0x20] sm:$0xff] %v696
                  %v698 = vld [vmem:[%s686 + $0x28] sm:$0xff]
                  %699 = vst [vmem:[%s687 + $0x28] sm:$0xff] %v698
                  %v700 = vld [vmem:[%s686 + $0x30] sm:$0xff]
                  %701 = vst [vmem:[%s687 + $0x30] sm:$0xff] %v700
                  %v702 = vld [vmem:[%s686 + $0x38] sm:$0xff]
                  %703 = vst [vmem:[%s687 + $0x38] sm:$0xff] %v702
                  %v704 = vld [vmem:[%s686 + $0x40] sm:$0xff]
                  %705 = vst [vmem:[%s687 + $0x40] sm:$0xff] %v704
                  %v706 = vld [vmem:[%s686 + $0x48] sm:$0xff]
                  %707 = vst [vmem:[%s687 + $0x48] sm:$0xff] %v706
                  %v708 = vld [vmem:[%s686 + $0x50] sm:$0xff]
                  %709 = vst [vmem:[%s687 + $0x50] sm:$0xff] %v708
                  %v710 = vld [vmem:[%s686 + $0x58] sm:$0xff]
                  %711 = vst [vmem:[%s687 + $0x58] sm:$0xff] %v710
                  %v712 = vld [vmem:[%s686 + $0x60] sm:$0xff]
                  %713 = vst [vmem:[%s687 + $0x60] sm:$0xff] %v712
                  %v714 = vld [vmem:[%s686 + $0x68] sm:$0xff]
                  %715 = vst [vmem:[%s687 + $0x68] sm:$0xff] %v714
                  %v716 = vld [vmem:[%s686 + $0x70] sm:$0xff]
                  %717 = vst [vmem:[%s687 + $0x70] sm:$0xff] %v716
                  %v718 = vld [vmem:[%s686 + $0x78] sm:$0xff]
                  %719 = vst [vmem:[%s687 + $0x78] sm:$0xff] %v718
                  %s720 = sadd.s32 1, %s685
                  %p721 = scmp.ge.s32.totalorder %s720, %s678
                  %s722 = scalar_select %p721, 0, %s720
                  %s723 = smul.u32 %s722, 128
                  %s724 = smul.u32 %s722, 128
                  %s725 = scalar_lea.vmem %s581, %s723 [#allocation2]
                  %s726 = scalar_lea.vmem %s592, %s724
                $region75: #{self_attention_block.2} parent=69 // loop_footer
                  %s682 = sadd.s32 %s680, 1
                $region76: #{self_attention_block.2} parent=69 // loop_footer_branch
                  %679 = sbr.rel target = $region72
                $region77: #{self_attention_block.2} parent=69 // loop_exit
                  _
                %s727 = sshrl.u32 %s588, 4
                %s728 = sand.u32 %s588, 15
                %s729 = smul.u32 %s727, 16
                %s730 = smul.u32 8, %s729
                %s731 = scalar_lea.vmem %s581, %s730 [#allocation2]
                %s732 = smul.u32 8, %s729
                %s733 = scalar_lea.vmem %s592, %s732
                // While loop
                $region78: #{self_attention_block.2} parent=69 // loop_pre_header
                  _
                $region79: #{self_attention_block.2} parent=69 // loop_header
                  %s735 = sphi 0, %s737
                  %p736 = scmp.ge.s32.totalorder %s735, %s728
                  %s740 = sphi 0, %s747
                  %s741 = sphi %s731, %s750
                  %s742 = sphi %s733, %s751
                $region80: #{self_attention_block.2} parent=69 // loop_header_branch
                  %739 = sbr.rel (%p736) target = $region84
                $region81: #{self_attention_block.2} parent=69 // loop_body
                  %v743 = vld [vmem:[%s741] sm:$0xff]
                  %744 = vst [vmem:[%s742] sm:$0xff] %v743
                  %s745 = sadd.s32 1, %s740
                  %p746 = scmp.ge.s32.totalorder %s745, %s728
                  %s747 = scalar_select %p746, 0, %s745
                  %s748 = smul.u32 %s747, 8
                  %s749 = smul.u32 %s747, 8
                  %s750 = scalar_lea.vmem %s731, %s748 [#allocation2]
                  %s751 = scalar_lea.vmem %s733, %s749
                $region82: #{self_attention_block.2} parent=69 // loop_footer
                  %s737 = sadd.s32 %s735, 1
                $region83: #{self_attention_block.2} parent=69 // loop_footer_branch
                  %734 = sbr.rel target = $region79
                $region84: #{self_attention_block.2} parent=69 // loop_exit
                  _
              $region70: #{self_attention_block.2} parent=47 // pred_fallthru
                _
              // Predicated region
              $region85: #{self_attention_block.2} parent=47 // pred_check
                _
              $region86: #{self_attention_block.2} parent=47 // pred_check_branch
                %753 = sbr.rel target = $region88
              $region87: #{self_attention_block.2} parent=47 // pred_region
                _
              $region88: #{self_attention_block.2} parent=47 // pred_fallthru
                _
            $region48: #{self_attention_block.2} parent=43 // pred_fallthru
              _
            // Predicated region
            $region49: #{self_attention_block.2} parent=43 // pred_check
              _
            $region50: #{self_attention_block.2} parent=43 // pred_check_branch
              %599 = sbr.rel target = $region52
            $region51: #{self_attention_block.2} parent=43 // pred_region
              %s601 = ssub.s32 256, 1
              %s602 = sshrl.u32 %s588, 4
              // While loop
              $region53: #{self_attention_block.2} parent=51 // loop_pre_header
                _
              $region54: #{self_attention_block.2} parent=51 // loop_header
                %s604 = sphi 0, %s606
                %p605 = scmp.ge.s32.totalorder %s604, %s602
                %s609 = sphi 0, %s646
                %s610 = sphi %s581, %s649
                %s611 = sphi %s592, %s650
              $region55: #{self_attention_block.2} parent=51 // loop_header_branch
                %608 = sbr.rel (%p605) target = $region59
              $region56: #{self_attention_block.2} parent=51 // loop_body
                %v612 = vld [vmem:[%s610] sm:%s601]
                %613 = vst [vmem:[%s611] sm:%s601] %v612
                %v614 = vld [vmem:[%s610 + $0x8] sm:%s601]
                %615 = vst [vmem:[%s611 + $0x8] sm:%s601] %v614
                %v616 = vld [vmem:[%s610 + $0x10] sm:%s601]
                %617 = vst [vmem:[%s611 + $0x10] sm:%s601] %v616
                %v618 = vld [vmem:[%s610 + $0x18] sm:%s601]
                %619 = vst [vmem:[%s611 + $0x18] sm:%s601] %v618
                %v620 = vld [vmem:[%s610 + $0x20] sm:%s601]
                %621 = vst [vmem:[%s611 + $0x20] sm:%s601] %v620
                %v622 = vld [vmem:[%s610 + $0x28] sm:%s601]
                %623 = vst [vmem:[%s611 + $0x28] sm:%s601] %v622
                %v624 = vld [vmem:[%s610 + $0x30] sm:%s601]
                %625 = vst [vmem:[%s611 + $0x30] sm:%s601] %v624
                %v626 = vld [vmem:[%s610 + $0x38] sm:%s601]
                %627 = vst [vmem:[%s611 + $0x38] sm:%s601] %v626
                %v628 = vld [vmem:[%s610 + $0x40] sm:%s601]
                %629 = vst [vmem:[%s611 + $0x40] sm:%s601] %v628
                %v630 = vld [vmem:[%s610 + $0x48] sm:%s601]
                %631 = vst [vmem:[%s611 + $0x48] sm:%s601] %v630
                %v632 = vld [vmem:[%s610 + $0x50] sm:%s601]
                %633 = vst [vmem:[%s611 + $0x50] sm:%s601] %v632
                %v634 = vld [vmem:[%s610 + $0x58] sm:%s601]
                %635 = vst [vmem:[%s611 + $0x58] sm:%s601] %v634
                %v636 = vld [vmem:[%s610 + $0x60] sm:%s601]
                %637 = vst [vmem:[%s611 + $0x60] sm:%s601] %v636
                %v638 = vld [vmem:[%s610 + $0x68] sm:%s601]
                %639 = vst [vmem:[%s611 + $0x68] sm:%s601] %v638
                %v640 = vld [vmem:[%s610 + $0x70] sm:%s601]
                %641 = vst [vmem:[%s611 + $0x70] sm:%s601] %v640
                %v642 = vld [vmem:[%s610 + $0x78] sm:%s601]
                %643 = vst [vmem:[%s611 + $0x78] sm:%s601] %v642
                %s644 = sadd.s32 1, %s609
                %p645 = scmp.ge.s32.totalorder %s644, %s602
                %s646 = scalar_select %p645, 0, %s644
                %s647 = smul.u32 %s646, 128
                %s648 = smul.u32 %s646, 128
                %s649 = scalar_lea.vmem %s581, %s647 [#allocation2]
                %s650 = scalar_lea.vmem %s592, %s648
              $region57: #{self_attention_block.2} parent=51 // loop_footer
                %s606 = sadd.s32 %s604, 1
              $region58: #{self_attention_block.2} parent=51 // loop_footer_branch
                %603 = sbr.rel target = $region54
              $region59: #{self_attention_block.2} parent=51 // loop_exit
                _
              %s651 = sshrl.u32 %s588, 4
              %s652 = sand.u32 %s588, 15
              %s653 = smul.u32 %s651, 16
              %s654 = smul.u32 8, %s653
              %s655 = scalar_lea.vmem %s581, %s654 [#allocation2]
              %s656 = smul.u32 8, %s653
              %s657 = scalar_lea.vmem %s592, %s656
              // While loop
              $region60: #{self_attention_block.2} parent=51 // loop_pre_header
                _
              $region61: #{self_attention_block.2} parent=51 // loop_header
                %s659 = sphi 0, %s661
                %p660 = scmp.ge.s32.totalorder %s659, %s652
                %s664 = sphi 0, %s671
                %s665 = sphi %s655, %s674
                %s666 = sphi %s657, %s675
              $region62: #{self_attention_block.2} parent=51 // loop_header_branch
                %663 = sbr.rel (%p660) target = $region66
              $region63: #{self_attention_block.2} parent=51 // loop_body
                %v667 = vld [vmem:[%s665] sm:%s601]
                %668 = vst [vmem:[%s666] sm:%s601] %v667
                %s669 = sadd.s32 1, %s664
                %p670 = scmp.ge.s32.totalorder %s669, %s652
                %s671 = scalar_select %p670, 0, %s669
                %s672 = smul.u32 %s671, 8
                %s673 = smul.u32 %s671, 8
                %s674 = scalar_lea.vmem %s655, %s672 [#allocation2]
                %s675 = scalar_lea.vmem %s657, %s673
              $region64: #{self_attention_block.2} parent=51 // loop_footer
                %s661 = sadd.s32 %s659, 1
              $region65: #{self_attention_block.2} parent=51 // loop_footer_branch
                %658 = sbr.rel target = $region61
              $region66: #{self_attention_block.2} parent=51 // loop_exit
                _
            $region52: #{self_attention_block.2} parent=43 // pred_fallthru
              _
          $region44: #{self_attention_block.2} parent=39 // pred_fallthru
            _
          %754 = vnop
        $region40: #{self_attention_block.2} parent=31 // pred_fallthru
          _
        // Predicated region
        $region89: #{self_attention_block.2} parent=31 // pred_check
          %p755 = pneg %p123
        $region90: #{self_attention_block.2} parent=31 // pred_check_branch
          %757 = sbr.rel (%p755) target = $region92
        $region91: #{self_attention_block.2} parent=31 // pred_region
          _
        $region92: #{self_attention_block.2} parent=31 // pred_fallthru
          _
        // Predicated region
        $region93: #{self_attention_block.2} parent=31 // pred_check
          %p758 = pneg %p123
        $region94: #{self_attention_block.2} parent=31 // pred_check_branch
          %760 = sbr.rel (%p758) target = $region96
        $region95: #{self_attention_block.2} parent=31 // pred_region
          _
        $region96: #{self_attention_block.2} parent=31 // pred_fallthru
          _
      $region32: #{self_attention_block.2} parent=5 // pred_fallthru
        _
      %p761 = scmp.le.s32.totalorder 2, %s11
      // Predicated region
      $region97: #{self_attention_block.2} parent=5 // pred_check
        %p762 = pneg %p761
      $region98: #{self_attention_block.2} parent=5 // pred_check_branch
        %764 = sbr.rel (%p762) target = $region100
      $region99: #{self_attention_block.2} parent=5 // pred_region
        %s765 = ssub.s32 %s11, 2
        // Predicated region
        $region101: #{self_attention_block.2} parent=99 // pred_check
          %p766 = pneg %p108
        $region102: #{self_attention_block.2} parent=99 // pred_check_branch
          %768 = sbr.rel (%p766) target = $region104
        $region103: #{self_attention_block.2} parent=99 // pred_region
          %s769 = sand.u32 %s93, 1
          %s770 = sand.u32 %s93, 1
          %s771 = smul.addr %s770, 128
          %s772 = scalar_lea.vmem [#allocation2], %s771
        $region104: #{self_attention_block.2} parent=99 // pred_fallthru
          _
      $region100: #{self_attention_block.2} parent=5 // pred_fallthru
        _
    $region6: #{self_attention_block.2} parent=1 // loop_footer
      %s15 = sadd.s32 1, %s11
    $region7: #{self_attention_block.2} parent=1 // loop_footer_branch
      %10 = sbr.rel target = $region3
    $region8: #{self_attention_block.2} parent=1 // loop_exit
      _

// kernel: self_attention_block.3
$region0: #{self_attention_block.3}
  #allocation0 [shape = 'u32[]', space=smem, size = 0x4, offset = 0x4, fixed_abs, tag = 'smem constant byte address 0x4 - core index']
  #allocation1 [shape = 'u32[72,128]{1,0:T(1,128)}', space=vmem, size = 0x9000, scoped, tag = 'internal scratch']
  %s0 = inlined_call_operand.vmem [shape: f32[2,225,8], index: 0, kind: input, shape index: {}]
  %s1 = inlined_call_operand.vmem [shape: f32[2,8], index: 1, kind: input, shape index: {}]
  %s2 = inlined_call_operand.vmem [shape: bf16[2,49,8], index: 2, kind: input, shape index: {}]
  %s3 = inlined_call_operand.vmem [shape: bf16[2,49,128], index: 3, kind: input, shape index: {}]
  %s4 = inlined_call_operand.vmem [shape: f32[1,128], index: 4, kind: input, shape index: {}]
  %s5 = inlined_call_operand.vmem [shape: f32[2,225,128], index: 5, kind: output, shape index: {}]
  %s6 = sld [smem:[#allocation0]]
  $region101: #{self_attention_block.3} parent=0
    _
  %s8 = ssub.s32 1, %s6
  %s9 = scalar_select 0, %s8, %s6
  $region1: #{self_attention_block.3} parent=0
    #allocation2 [shape = 'u8[131072]{0}', space=vmem, size = 0x20000, scoped, tag = 'output window, operand 0']
    loop: start=0, step=1, limit=6
    $region2: #{self_attention_block.3} parent=1 // loop_pre_header
      _
    $region3: #{self_attention_block.3} parent=1 // loop_header
      %s11 = sphi 0, %s15
      %p12 = scmp.ge.s32.totalorder %s11, 6
      %s18 = sphi 0, %s30
      %s19 = sphi 0, %s26
      %s20 = sphi 0, %s18
      %s21 = sphi 0, %s19
      %s22 = sphi 0, %s20
      %s23 = sphi 0, %s21
      %s35 = sphi 0, %s37
      %s38 = sphi 0, %s35
      %s39 = sphi 0, %s38
      %s55 = sphi 0, %s39
      %s59 = sphi 0, %s59
      %s61 = sphi 0, %s59
      %s62 = sphi 0, %s61
      %s76 = sphi 0, %s62
      %s82 = sphi 0, %s84
      %s85 = sphi 0, %s82
      %s86 = sphi 0, %s85
      %s102 = sphi 0, %s86
      %s108 = sphi 0, %s110
      %s111 = sphi 0, %s108
      %s112 = sphi 0, %s111
      %s128 = sphi 0, %s112
      %s132 = sphi 0, %s132
      %s134 = sphi 0, %s132
      %s135 = sphi 0, %s134
      %s149 = sphi 0, %s135
      %s157 = sphi 0, %s159
      %s160 = sphi 0, %s157
      %s161 = sphi 0, %s160
      %s177 = sphi 0, %s161
    $region4: #{self_attention_block.3} parent=1 // loop_header_branch
      %14 = sbr.rel (%p12) target = $region8
    $region5: #{self_attention_block.3} parent=1 // loop_body
      %s16 = ssub.s32 %s11, 1
      %s17 = ssub.s32 %s11, 2
      %s24 = sadd.s32 1, %s19
      %p25 = scmp.ge.s32.totalorder %s24, 2
      %s26 = scalar_select %p25, 0, %s24
      %s27 = sadd.s32 1, %s18
      %s28 = scalar_select %p25, %s27, %s18
      %p29 = scmp.ge.s32.totalorder %s28, 2
      %s30 = scalar_select %p29, 0, %s28
      %s31 = ssub.s32 %s18, %s30
      %s32 = ssub.s32 %s19, %s26
      %s33 = sor.u32 %s31, %s32
      %p34 = scmp.eq.s32.totalorder %s33, 0
      %s36 = sadd.s32 %s35, 1
      %s37 = scalar_select %p34, %s35, %s36
      %p40 = pneg %p34
      %p41 = scmp.eq.s32.totalorder %s11, 3
      %p42 = por %p40, %p41
      %p43 = scmp.ne.s32.totalorder %s35, %s38
      %p44 = scmp.eq.s32.totalorder %s11, 0
      %p45 = por %p43, %p44
      %p46 = scmp.ne.s32.totalorder %s35, %s38
      %p47 = scmp.eq.s32.totalorder %s16, 3
      %p48 = por %p46, %p47
      %p49 = scmp.ne.s32.totalorder %s38, %s39
      %p50 = scmp.eq.s32.totalorder %s16, 0
      %p51 = por %p49, %p50
      %p52 = scmp.ne.s32.totalorder %s38, %s39
      %p53 = scmp.eq.s32.totalorder %s17, 3
      %p54 = por %p52, %p53
      %p56 = scmp.ne.s32.totalorder %s39, %s55
      %p57 = scmp.eq.s32.totalorder %s17, 0
      %p58 = por %p56, %p57
      %s60 = sadd.s32 %s59, 1
      %p63 = scmp.eq.s32.totalorder %s11, 3
      %p64 = scmp.ne.s32.totalorder %s59, %s61
      %p65 = scmp.eq.s32.totalorder %s11, 0
      %p66 = por %p64, %p65
      %p67 = scmp.ne.s32.totalorder %s59, %s61
      %p68 = scmp.eq.s32.totalorder %s16, 3
      %p69 = por %p67, %p68
      %p70 = scmp.ne.s32.totalorder %s61, %s62
      %p71 = scmp.eq.s32.totalorder %s16, 0
      %p72 = por %p70, %p71
      %p73 = scmp.ne.s32.totalorder %s61, %s62
      %p74 = scmp.eq.s32.totalorder %s17, 3
      %p75 = por %p73, %p74
      %p77 = scmp.ne.s32.totalorder %s62, %s76
      %p78 = scmp.eq.s32.totalorder %s17, 0
      %p79 = por %p77, %p78
      %s80 = ssub.s32 %s18, %s30
      %p81 = scmp.eq.s32.totalorder %s80, 0
      %s83 = sadd.s32 %s82, 1
      %s84 = scalar_select %p81, %s82, %s83
      %p87 = pneg %p81
      %p88 = scmp.eq.s32.totalorder %s11, 3
      %p89 = por %p87, %p88
      %p90 = scmp.ne.s32.totalorder %s82, %s85
      %p91 = scmp.eq.s32.totalorder %s11, 0
      %p92 = por %p90, %p91
      %p93 = scmp.ne.s32.totalorder %s82, %s85
      %p94 = scmp.eq.s32.totalorder %s16, 3
      %p95 = por %p93, %p94
      %p96 = scmp.ne.s32.totalorder %s85, %s86
      %p97 = scmp.eq.s32.totalorder %s16, 0
      %p98 = por %p96, %p97
      %p99 = scmp.ne.s32.totalorder %s85, %s86
      %p100 = scmp.eq.s32.totalorder %s17, 3
      %p101 = por %p99, %p100
      %p103 = scmp.ne.s32.totalorder %s86, %s102
      %p104 = scmp.eq.s32.totalorder %s17, 0
      %p105 = por %p103, %p104
      %s106 = ssub.s32 %s18, %s30
      %p107 = scmp.eq.s32.totalorder %s106, 0
      %s109 = sadd.s32 %s108, 1
      %s110 = scalar_select %p107, %s108, %s109
      %p113 = pneg %p107
      %p114 = scmp.eq.s32.totalorder %s11, 3
      %p115 = por %p113, %p114
      %p116 = scmp.ne.s32.totalorder %s108, %s111
      %p117 = scmp.eq.s32.totalorder %s11, 0
      %p118 = por %p116, %p117
      %p119 = scmp.ne.s32.totalorder %s108, %s111
      %p120 = scmp.eq.s32.totalorder %s16, 3
      %p121 = por %p119, %p120
      %p122 = scmp.ne.s32.totalorder %s111, %s112
      %p123 = scmp.eq.s32.totalorder %s16, 0
      %p124 = por %p122, %p123
      %p125 = scmp.ne.s32.totalorder %s111, %s112
      %p126 = scmp.eq.s32.totalorder %s17, 3
      %p127 = por %p125, %p126
      %p129 = scmp.ne.s32.totalorder %s112, %s128
      %p130 = scmp.eq.s32.totalorder %s17, 0
      %p131 = por %p129, %p130
      %s133 = sadd.s32 %s132, 1
      %p136 = scmp.eq.s32.totalorder %s11, 3
      %p137 = scmp.ne.s32.totalorder %s132, %s134
      %p138 = scmp.eq.s32.totalorder %s11, 0
      %p139 = por %p137, %p138
      %p140 = scmp.ne.s32.totalorder %s132, %s134
      %p141 = scmp.eq.s32.totalorder %s16, 3
      %p142 = por %p140, %p141
      %p143 = scmp.ne.s32.totalorder %s134, %s135
      %p144 = scmp.eq.s32.totalorder %s16, 0
      %p145 = por %p143, %p144
      %p146 = scmp.ne.s32.totalorder %s134, %s135
      %p147 = scmp.eq.s32.totalorder %s17, 3
      %p148 = por %p146, %p147
      %p150 = scmp.ne.s32.totalorder %s135, %s149
      %p151 = scmp.eq.s32.totalorder %s17, 0
      %p152 = por %p150, %p151
      %s153 = ssub.s32 %s18, %s30
      %s154 = ssub.s32 %s19, %s26
      %s155 = sor.u32 %s153, %s154
      %p156 = scmp.eq.s32.totalorder %s155, 0
      %s158 = sadd.s32 %s157, 1
      %s159 = scalar_select %p156, %s157, %s158
      %p162 = pneg %p156
      %p163 = scmp.eq.s32.totalorder %s11, 3
      %p164 = por %p162, %p163
      %p165 = scmp.ne.s32.totalorder %s157, %s160
      %p166 = scmp.eq.s32.totalorder %s11, 0
      %p167 = por %p165, %p166
      %p168 = scmp.ne.s32.totalorder %s157, %s160
      %p169 = scmp.eq.s32.totalorder %s16, 3
      %p170 = por %p168, %p169
      %p171 = scmp.ne.s32.totalorder %s160, %s161
      %p172 = scmp.eq.s32.totalorder %s16, 0
      %p173 = por %p171, %p172
      %p174 = scmp.ne.s32.totalorder %s160, %s161
      %p175 = scmp.eq.s32.totalorder %s17, 3
      %p176 = por %p174, %p175
      %p178 = scmp.ne.s32.totalorder %s161, %s177
      %p179 = scmp.eq.s32.totalorder %s17, 0
      %p180 = por %p178, %p179
      %p181 = scmp.le.s32.totalorder 1, %s11
      %p182 = scmp.lt.s32.totalorder %s11, 5
      %p183 = pnand %p181, %p182
      %p184 = pneg %p183
      // Predicated region
      $region9: #{self_attention_block.3} parent=5 // pred_check
        _
      $region10: #{self_attention_block.3} parent=5 // pred_check_branch
        %186 = sbr.rel (%p183) target = $region12
      $region11: #{self_attention_block.3} parent=5 // pred_region
        %s187 = ssub.s32 %s11, 1
        // Predicated region
        $region13: #{self_attention_block.3} parent=11 // pred_check
          %p188 = pneg %p72
        $region14: #{self_attention_block.3} parent=11 // pred_check_branch
          %190 = sbr.rel (%p188) target = $region16
        $region15: #{self_attention_block.3} parent=11 // pred_region
          _
        $region16: #{self_attention_block.3} parent=11 // pred_fallthru
          _
        // Predicated region
        $region17: #{self_attention_block.3} parent=11 // pred_check
          %p191 = pneg %p145
        $region18: #{self_attention_block.3} parent=11 // pred_check_branch
          %193 = sbr.rel (%p191) target = $region20
        $region19: #{self_attention_block.3} parent=11 // pred_region
          _
        $region20: #{self_attention_block.3} parent=11 // pred_fallthru
          _
      $region12: #{self_attention_block.3} parent=5 // pred_fallthru
        _
      %p194 = scmp.lt.s32.totalorder %s11, 4
      // Predicated region
      $region21: #{self_attention_block.3} parent=5 // pred_check
        %p195 = pneg %p194
      $region22: #{self_attention_block.3} parent=5 // pred_check_branch
        %197 = sbr.rel (%p195) target = $region24
      $region23: #{self_attention_block.3} parent=5 // pred_region
        // Predicated region
        $region25: #{self_attention_block.3} parent=23 // pred_check
          %p198 = pneg %p45
        $region26: #{self_attention_block.3} parent=23 // pred_check_branch
          %200 = sbr.rel (%p198) target = $region28
        $region27: #{self_attention_block.3} parent=23 // pred_region
          %s201 = smul.u32 16, %s19
          %s202 = ssub.s32 29, %s201
          %p203 = scmp.lt.s32.totalorder %s202, 16
          %s204 = scalar_select %p203, %s202, 16
          %s205 = smul.u32 8, %s204
          %p206 = scmp.lt.s32.totalorder %s18, 1
          %s207 = scalar_select %p206, %s18, 1
          %p208 = scmp.lt.s32.totalorder %s201, 28
          %s209 = scalar_select %p208, %s201, 28
          %s210 = smul.addr %s207, 29
          %s211 = sadd.s32 %s209, %s210
          %s212 = smul.addr %s211, 8
          %s213 = scalar_lea.vmem %s0, %s212
          %s214 = smul.u32 16, %s19
          %s215 = ssub.s32 29, %s214
          %p216 = scmp.lt.s32.totalorder %s215, 16
          %s217 = scalar_select %p216, %s215, 16
          %s218 = smul.u32 8, %s217
        $region28: #{self_attention_block.3} parent=23 // pred_fallthru
          _
        // Predicated region
        $region29: #{self_attention_block.3} parent=23 // pred_check
          %p219 = pneg %p92
        $region30: #{self_attention_block.3} parent=23 // pred_check_branch
          %221 = sbr.rel (%p219) target = $region32
        $region31: #{self_attention_block.3} parent=23 // pred_region
          %p222 = scmp.lt.s32.totalorder %s18, 1
          %s223 = scalar_select %p222, %s18, 1
          %s224 = smul.addr %s223, 7
          %s225 = smul.addr %s224, 4
          %s226 = scalar_lea.vmem %s2, %s225
        $region32: #{self_attention_block.3} parent=23 // pred_fallthru
          _
        // Predicated region
        $region33: #{self_attention_block.3} parent=23 // pred_check
          %p227 = pneg %p118
        $region34: #{self_attention_block.3} parent=23 // pred_check_branch
          %229 = sbr.rel (%p227) target = $region36
        $region35: #{self_attention_block.3} parent=23 // pred_region
          %p230 = scmp.lt.s32.totalorder %s18, 1
          %s231 = scalar_select %p230, %s18, 1
          %s232 = smul.addr %s231, 7
          %s233 = smul.addr %s232, 4
          %s234 = scalar_lea.vmem %s3, %s233
        $region36: #{self_attention_block.3} parent=23 // pred_fallthru
          _
      $region24: #{self_attention_block.3} parent=5 // pred_fallthru
        _
      %p235 = scmp.le.s32.totalorder 1, %s11
      %p236 = scmp.lt.s32.totalorder %s11, 5
      %p237 = pnand %p235, %p236
      %p238 = pneg %p237
      // Predicated region
      $region37: #{self_attention_block.3} parent=5 // pred_check
        _
      $region38: #{self_attention_block.3} parent=5 // pred_check_branch
        %240 = sbr.rel (%p237) target = $region40
      $region39: #{self_attention_block.3} parent=5 // pred_region
        %s241 = ssub.s32 %s11, 1
        %s242 = smul.u32 16, %s21
        %s243 = ssub.s32 29, %s242
        %p244 = scmp.lt.s32.totalorder %s243, 16
        %s245 = scalar_select %p244, %s243, 16
        %s246 = smul.u32 8, %s245
        %p247 = scmp.lt.s32.totalorder %s20, 1
        %s248 = scalar_select %p247, %s20, 1
        %p249 = scmp.lt.s32.totalorder %s242, 28
        %s250 = scalar_select %p249, %s242, 28
        %s251 = smul.addr %s248, 29
        %s252 = sadd.s32 %s250, %s251
        %s253 = smul.addr %s252, 8
        %s254 = scalar_lea.vmem %s0, %s253
        %p255 = pneg %p51
        %p256 = pneg %p48
        %p257 = pneg %p72
        %p258 = pneg %p69
        %p259 = scmp.lt.s32.totalorder %s20, 1
        %s260 = scalar_select %p259, %s20, 1
        %s261 = smul.addr %s260, 7
        %s262 = smul.addr %s261, 4
        %s263 = scalar_lea.vmem %s2, %s262
        %p264 = pneg %p98
        %p265 = pneg %p95
        %p266 = scmp.lt.s32.totalorder %s20, 1
        %s267 = scalar_select %p266, %s20, 1
        %s268 = smul.addr %s267, 7
        %s269 = smul.addr %s268, 4
        %s270 = scalar_lea.vmem %s3, %s269
        %p271 = pneg %p124
        %p272 = pneg %p121
        %p273 = pneg %p145
        %p274 = pneg %p142
        %p275 = pneg %p173
        %p276 = pneg %p170
        %s277 = sand.u32 %s160, 1
        %s278 = sand.u32 %s160, 1
        %s279 = smul.addr %s278, 128
        %s280 = scalar_lea.vmem [#allocation2], %s279
        %s281 = smul.u32 16, %s21
        %s282 = ssub.s32 29, %s281
        %p283 = scmp.lt.s32.totalorder %s282, 16
        %s284 = scalar_select %p283, %s282, 16
        %s285 = smul.u32 8, %s284
        %p286 = scmp.lt.s32.totalorder %s20, 1
        %s287 = scalar_select %p286, %s20, 1
        %p288 = scmp.lt.s32.totalorder %s281, 28
        %s289 = scalar_select %p288, %s281, 28
        %s290 = smul.addr %s287, 29
        %s291 = sadd.s32 %s289, %s290
        %s292 = smul.addr %s291, 8
        %s293 = scalar_lea.vmem %s0, %s292
        %s294 = smul.u32 16, %s21
        %s295 = ssub.s32 29, %s294
        %p296 = scmp.lt.s32.totalorder %s295, 16
        %s297 = scalar_select %p296, %s295, 16
        %s298 = smul.u32 8, %s297
        %p299 = scmp.lt.s32.totalorder %s20, 1
        %s300 = scalar_select %p299, %s20, 1
        %s301 = smul.addr %s300, 7
        %s302 = smul.addr %s301, 4
        %s303 = scalar_lea.vmem %s2, %s302
        %p304 = scmp.lt.s32.totalorder %s20, 1
        %s305 = scalar_select %p304, %s20, 1
        %s306 = smul.addr %s305, 7
        %s307 = smul.addr %s306, 4
        %s308 = scalar_lea.vmem %s3, %s307
        %s309 = smul.u32 16, %s21
        %s310 = ssub.s32 29, %s309
        %p311 = scmp.lt.s32.totalorder %s310, 16
        %s312 = scalar_select %p311, %s310, 16
        %s313 = smul.u32 8, %s312
        %s315 = smul.u32 %s21, 128
        %v316 = vld [vmem:[%s1] sm:$0x1]
        %v317 = vld [vmem:[%s1 + $0x1] sm:$0x1]
        %v318 = vld [vmem:[%s293] sm:$0xff]
        %v319 = vld [vmem:[%s293 + $0x8] sm:$0xff]
        %v320 = vld [vmem:[%s293 + $0x10] sm:$0xff]
        %v321 = vld [vmem:[%s293 + $0x18] sm:$0xff]
        %v322 = vld [vmem:[%s293 + $0x20] sm:$0xff]
        %v323 = vld [vmem:[%s293 + $0x28] sm:$0xff]
        %v324 = vld [vmem:[%s293 + $0x30] sm:$0xff]
        %v325 = vld [vmem:[%s293 + $0x38] sm:$0xff]
        %v326 = vld [vmem:[%s293 + $0x40] sm:$0xff]
        %v327 = vld [vmem:[%s293 + $0x48] sm:$0xff]
        %v328 = vld [vmem:[%s293 + $0x50] sm:$0xff]
        %v329 = vld [vmem:[%s293 + $0x58] sm:$0xff]
        %v330 = vld [vmem:[%s293 + $0x60] sm:$0xff]
        %v331 = vld [vmem:[%s293 + $0x68] sm:$0xff]
        %v332 = vld [vmem:[%s293 + $0x70] sm:$0xff]
        %v333 = vld [vmem:[%s293 + $0x78] sm:$0xff]
        %v334 = vperm.slane %v316, 0
        %v335 = vsub.f32 %v318, %v334
        %v336 = vsub.f32 %v319, %v334
        %v337 = vsub.f32 %v320, %v334
        %v338 = vsub.f32 %v321, %v334
        %v339 = vsub.f32 %v322, %v334
        %v340 = vsub.f32 %v323, %v334
        %v341 = vsub.f32 %v324, %v334
        %v342 = vsub.f32 %v325, %v334
        %v343 = vsub.f32 %v326, %v334
        %v344 = vsub.f32 %v327, %v334
        %v345 = vsub.f32 %v328, %v334
        %v346 = vsub.f32 %v329, %v334
        %v347 = vsub.f32 %v330, %v334
        %v348 = vsub.f32 %v331, %v334
        %v349 = vsub.f32 %v332, %v334
        %v350 = vsub.f32 %v333, %v334
        %v351 = vperm.slane %v317, 0
        %v352 = vmul.f32 %v335, %v351
        %v353 = vmul.f32 %v336, %v351
        %v354 = vmul.f32 %v337, %v351
        %v355 = vmul.f32 %v338, %v351
        %v356 = vmul.f32 %v339, %v351
        %v357 = vmul.f32 %v340, %v351
        %v358 = vmul.f32 %v341, %v351
        %v359 = vmul.f32 %v342, %v351
        %v360 = vmul.f32 %v343, %v351
        %v361 = vmul.f32 %v344, %v351
        %v362 = vmul.f32 %v345, %v351
        %v363 = vmul.f32 %v346, %v351
        %v364 = vmul.f32 %v347, %v351
        %v365 = vmul.f32 %v348, %v351
        %v366 = vmul.f32 %v349, %v351
        %v367 = vmul.f32 %v350, %v351
        %v368 = vmax.f32 %v352, 0.0
        %v369 = vmax.f32 %v353, 0.0
        %v370 = vmax.f32 %v354, 0.0
        %v371 = vmax.f32 %v355, 0.0
        %v372 = vmax.f32 %v356, 0.0
        %v373 = vmax.f32 %v357, 0.0
        %v374 = vmax.f32 %v358, 0.0
        %v375 = vmax.f32 %v359, 0.0
        %v376 = vmax.f32 %v360, 0.0
        %v377 = vmax.f32 %v361, 0.0
        %v378 = vmax.f32 %v362, 0.0
        %v379 = vmax.f32 %v363, 0.0
        %v380 = vmax.f32 %v364, 0.0
        %v381 = vmax.f32 %v365, 0.0
        %v382 = vmax.f32 %v366, 0.0
        %v383 = vmax.f32 %v367, 0.0
        %v384 = vpack.c.bf16 %v369, %v368
        %v385 = vpack.c.bf16 %v371, %v370
        %v386 = vpack.c.bf16 %v373, %v372
        %v387 = vpack.c.bf16 %v375, %v374
        %v388 = vpack.c.bf16 %v377, %v376
        %v389 = vpack.c.bf16 %v379, %v378
        %v390 = vpack.c.bf16 %v381, %v380
        %v391 = vpack.c.bf16 %v383, %v382
        %v392 = vld [vmem:[%s303] sm:$0xf]
        %v393 = vld [vmem:[%s303 + $0x4] sm:$0xf]
        %v394 = vld [vmem:[%s303 + $0x8] sm:$0xf]
        %v395 = vld [vmem:[%s303 + $0xc] sm:$0xf]
        %v396 = vld [vmem:[%s303 + $0x10] sm:$0xf]
        %v397 = vld [vmem:[%s303 + $0x14] sm:$0xf]
        %v398 = vld [vmem:[%s303 + $0x18] sm:$0x1]
        %v399 = vlaneseq
        %v400 = vshrl.u32 %v399, 7
        %v401 = vadd.s32 %v400, 8
        %v402 = vadd.s32 %v400, 16
        %v403 = vadd.s32 %v400, 24
        %v404 = vadd.s32 %v400, 32
        %v405 = vadd.s32 %v400, 40
        %v406 = vadd.s32 %v400, 48
        %v407 = vadd.s32 %v400, 56
        %v408 = vadd.s32 %v400, 64
        %v409 = vadd.s32 %v400, 72
        %v410 = vadd.s32 %v400, 80
        %v411 = vadd.s32 %v400, 88
        %v412 = vadd.s32 %v400, 96
        %v413 = vadd.s32 %v400, 104
        %v414 = vadd.s32 %v400, 112
        %v415 = vadd.s32 %v400, 120
        %v416 = vstv %s315
        %v417 = vadd.s32 %v416, %v400
        %v418 = vadd.s32 %v416, %v401
        %v419 = vadd.s32 %v416, %v402
        %v420 = vadd.s32 %v416, %v403
        %v421 = vadd.s32 %v416, %v404
        %v422 = vadd.s32 %v416, %v405
        %v423 = vadd.s32 %v416, %v406
        %v424 = vadd.s32 %v416, %v407
        %v425 = vadd.s32 %v416, %v408
        %v426 = vadd.s32 %v416, %v409
        %v427 = vadd.s32 %v416, %v410
        %v428 = vadd.s32 %v416, %v411
        %v429 = vadd.s32 %v416, %v412
        %v430 = vadd.s32 %v416, %v413
        %v431 = vadd.s32 %v416, %v414
        %v432 = vadd.s32 %v416, %v415
        %v433 = vcvt.s32.f32 %v417
        %v434 = vcvt.s32.f32 %v418
        %v435 = vcvt.s32.f32 %v419
        %v436 = vcvt.s32.f32 %v420
        %v437 = vcvt.s32.f32 %v421
        %v438 = vcvt.s32.f32 %v422
        %v439 = vcvt.s32.f32 %v423
        %v440 = vcvt.s32.f32 %v424
        %v441 = vcvt.s32.f32 %v425
        %v442 = vcvt.s32.f32 %v426
        %v443 = vcvt.s32.f32 %v427
        %v444 = vcvt.s32.f32 %v428
        %v445 = vcvt.s32.f32 %v429
        %v446 = vcvt.s32.f32 %v430
        %v447 = vcvt.s32.f32 %v431
        %v448 = vcvt.s32.f32 %v432
        %v449 = vrcp.pop 15.0
        %v450 = vmul.f32 15.0, %v449
        %v451 = vsub.f32 1.0, %v450
        %v452 = vmul.f32 %v449, %v451
        %v453 = vadd.f32 %v449, %v452
        %vm454 = vweird.f32 %v449
        %v455 = vsel %vm454, %v449, %v453
        %v456 = vmul.f32 %v433, %v455
        %v457 = vmul.f32 %v434, %v455
        %v458 = vmul.f32 %v435, %v455
        %v459 = vmul.f32 %v436, %v455
        %v460 = vmul.f32 %v437, %v455
        %v461 = vmul.f32 %v438, %v455
        %v462 = vmul.f32 %v439, %v455
        %v463 = vmul.f32 %v440, %v455
        %v464 = vmul.f32 %v441, %v455
        %v465 = vmul.f32 %v442, %v455
        %v466 = vmul.f32 %v443, %v455
        %v467 = vmul.f32 %v444, %v455
        %v468 = vmul.f32 %v445, %v455
        %v469 = vmul.f32 %v446, %v455
        %v470 = vmul.f32 %v447, %v455
        %v471 = vmul.f32 %v448, %v455
        %v472 = vfloor.f32 %v456
        %v473 = vfloor.f32 %v457
        %v474 = vfloor.f32 %v458
        %v475 = vfloor.f32 %v459
        %v476 = vfloor.f32 %v460
        %v477 = vfloor.f32 %v461
        %v478 = vfloor.f32 %v462
        %v479 = vfloor.f32 %v463
        %v480 = vfloor.f32 %v464
        %v481 = vfloor.f32 %v465
        %v482 = vfloor.f32 %v466
        %v483 = vfloor.f32 %v467
        %v484 = vfloor.f32 %v468
        %v485 = vfloor.f32 %v469
        %v486 = vfloor.f32 %v470
        %v487 = vfloor.f32 %v471
        %v488 = vmul.f32 %v472, 15.0
        %v489 = vmul.f32 %v473, 15.0
        %v490 = vmul.f32 %v474, 15.0
        %v491 = vmul.f32 %v475, 15.0
        %v492 = vmul.f32 %v476, 15.0
        %v493 = vmul.f32 %v477, 15.0
        %v494 = vmul.f32 %v478, 15.0
        %v495 = vmul.f32 %v479, 15.0
        %v496 = vmul.f32 %v480, 15.0
        %v497 = vmul.f32 %v481, 15.0
        %v498 = vmul.f32 %v482, 15.0
        %v499 = vmul.f32 %v483, 15.0
        %v500 = vmul.f32 %v484, 15.0
        %v501 = vmul.f32 %v485, 15.0
        %v502 = vmul.f32 %v486, 15.0
        %v503 = vmul.f32 %v487, 15.0
        %v504 = vsub.f32 %v433, %v488
        %v505 = vsub.f32 %v434, %v489
        %v506 = vsub.f32 %v435, %v490
        %v507 = vsub.f32 %v436, %v491
        %v508 = vsub.f32 %v437, %v492
        %v509 = vsub.f32 %v438, %v493
        %v510 = vsub.f32 %v439, %v494
        %v511 = vsub.f32 %v440, %v495
        %v512 = vsub.f32 %v441, %v496
        %v513 = vsub.f32 %v442, %v497
        %v514 = vsub.f32 %v443, %v498
        %v515 = vsub.f32 %v444, %v499
        %v516 = vsub.f32 %v445, %v500
        %v517 = vsub.f32 %v446, %v501
        %v518 = vsub.f32 %v447, %v502
        %v519 = vsub.f32 %v448, %v503
        %v520 = vmul.f32 %v504, %v455
        %v521 = vmul.f32 %v505, %v455
        %v522 = vmul.f32 %v506, %v455
        %v523 = vmul.f32 %v507, %v455
        %v524 = vmul.f32 %v508, %v455
        %v525 = vmul.f32 %v509, %v455
        %v526 = vmul.f32 %v510, %v455
        %v527 = vmul.f32 %v511, %v455
        %v528 = vmul.f32 %v512, %v455
        %v529 = vmul.f32 %v513, %v455
        %v530 = vmul.f32 %v514, %v455
        %v531 = vmul.f32 %v515, %v455
        %v532 = vmul.f32 %v516, %v455
        %v533 = vmul.f32 %v517, %v455
        %v534 = vmul.f32 %v518, %v455
        %v535 = vmul.f32 %v519, %v455
        %v536 = vmul.f32 %v472, %v455
        %v537 = vmul.f32 %v473, %v455
        %v538 = vmul.f32 %v474, %v455
        %v539 = vmul.f32 %v475, %v455
        %v540 = vmul.f32 %v476, %v455
        %v541 = vmul.f32 %v477, %v455
        %v542 = vmul.f32 %v478, %v455
        %v543 = vmul.f32 %v479, %v455
        %v544 = vmul.f32 %v480, %v455
        %v545 = vmul.f32 %v481, %v455
        %v546 = vmul.f32 %v482, %v455
        %v547 = vmul.f32 %v483, %v455
        %v548 = vmul.f32 %v484, %v455
        %v549 = vmul.f32 %v485, %v455
        %v550 = vmul.f32 %v486, %v455
        %v551 = vmul.f32 %v487, %v455
        %v552 = vlaneseq
        %v553 = vand.u32 %v552, 127
        %v554 = vcvt.s32.f32 %v553
        %v555 = vrcp.pop 7.0
        %v556 = vmul.f32 7.0, %v555
        %v557 = vsub.f32 1.0, %v556
        %v558 = vmul.f32 %v555, %v557
        %v559 = vadd.f32 %v555, %v558
        %vm560 = vweird.f32 %v555
        %v561 = vsel %vm560, %v555, %v559
        %v562 = vmul.f32 %v554, %v561
        %v563 = vfloor.f32 %v562
        %v564 = vmul.f32 %v563, 7.0
        %v565 = vsub.f32 %v554, %v564
        %vm566 = vcmp.ge.f32.partialorder %v554, 0.0
        %vm567 = vcmp.lt.f32.partialorder %v554, 49.0
        %vm568 = vmand %vm566, %vm567
        %v569 = vmul.f32 %v565, %v561
        %v570 = vsel %vm568, %v569, 0.0
        %v571 = vmul.f32 %v563, %v561
        %v572 = vsel %vm568, %v571, 0.0
        %v573 = vsub.f32 %v520, %v570
        %v574 = vsub.f32 %v521, %v570
        %v575 = vsub.f32 %v522, %v570
        %v576 = vsub.f32 %v523, %v570
        %v577 = vsub.f32 %v524, %v570
        %v578 = vsub.f32 %v525, %v570
        %v579 = vsub.f32 %v526, %v570
        %v580 = vsub.f32 %v527, %v570
        %v581 = vsub.f32 %v528, %v570
        %v582 = vsub.f32 %v529, %v570
        %v583 = vsub.f32 %v530, %v570
        %v584 = vsub.f32 %v531, %v570
        %v585 = vsub.f32 %v532, %v570
        %v586 = vsub.f32 %v533, %v570
        %v587 = vsub.f32 %v534, %v570
        %v588 = vsub.f32 %v535, %v570
        %v589 = vsub.f32 %v536, %v572
        %v590 = vsub.f32 %v537, %v572
        %v591 = vsub.f32 %v538, %v572
        %v592 = vsub.f32 %v539, %v572
        %v593 = vsub.f32 %v540, %v572
        %v594 = vsub.f32 %v541, %v572
        %v595 = vsub.f32 %v542, %v572
        %v596 = vsub.f32 %v543, %v572
        %v597 = vsub.f32 %v544, %v572
        %v598 = vsub.f32 %v545, %v572
        %v599 = vsub.f32 %v546, %v572
        %v600 = vsub.f32 %v547, %v572
        %v601 = vsub.f32 %v548, %v572
        %v602 = vsub.f32 %v549, %v572
        %v603 = vsub.f32 %v550, %v572
        %v604 = vsub.f32 %v551, %v572
        %v605 = vmul.f32 %v573, %v573
        %v606 = vmul.f32 %v574, %v574
        %v607 = vmul.f32 %v575, %v575
        %v608 = vmul.f32 %v576, %v576
        %v609 = vmul.f32 %v577, %v577
        %v610 = vmul.f32 %v578, %v578
        %v611 = vmul.f32 %v579, %v579
        %v612 = vmul.f32 %v580, %v580
        %v613 = vmul.f32 %v581, %v581
        %v614 = vmul.f32 %v582, %v582
        %v615 = vmul.f32 %v583, %v583
        %v616 = vmul.f32 %v584, %v584
        %v617 = vmul.f32 %v585, %v585
        %v618 = vmul.f32 %v586, %v586
        %v619 = vmul.f32 %v587, %v587
        %v620 = vmul.f32 %v588, %v588
        %v621 = vmul.f32 %v589, %v589
        %v622 = vmul.f32 %v590, %v590
        %v623 = vmul.f32 %v591, %v591
        %v624 = vmul.f32 %v592, %v592
        %v625 = vmul.f32 %v593, %v593
        %v626 = vmul.f32 %v594, %v594
        %v627 = vmul.f32 %v595, %v595
        %v628 = vmul.f32 %v596, %v596
        %v629 = vmul.f32 %v597, %v597
        %v630 = vmul.f32 %v598, %v598
        %v631 = vmul.f32 %v599, %v599
        %v632 = vmul.f32 %v600, %v600
        %v633 = vmul.f32 %v601, %v601
        %v634 = vmul.f32 %v602, %v602
        %v635 = vmul.f32 %v603, %v603
        %v636 = vmul.f32 %v604, %v604
        %v637 = vadd.f32 %v605, %v621
        %v638 = vadd.f32 %v606, %v622
        %v639 = vadd.f32 %v607, %v623
        %v640 = vadd.f32 %v608, %v624
        %v641 = vadd.f32 %v609, %v625
        %v642 = vadd.f32 %v610, %v626
        %v643 = vadd.f32 %v611, %v627
        %v644 = vadd.f32 %v612, %v628
        %v645 = vadd.f32 %v613, %v629
        %v646 = vadd.f32 %v614, %v630
        %v647 = vadd.f32 %v615, %v631
        %v648 = vadd.f32 %v616, %v632
        %v649 = vadd.f32 %v617, %v633
        %v650 = vadd.f32 %v618, %v634
        %v651 = vadd.f32 %v619, %v635
        %v652 = vadd.f32 %v620, %v636
        %v653 = vmul.f32 %v637, -12.5
        %v654 = vmul.f32 %v638, -12.5
        %v655 = vmul.f32 %v639, -12.5
        %v656 = vmul.f32 %v640, -12.5
        %v657 = vmul.f32 %v641, -12.5
        %v658 = vmul.f32 %v642, -12.5
        %v659 = vmul.f32 %v643, -12.5
        %v660 = vmul.f32 %v644, -12.5
        %v661 = vmul.f32 %v645, -12.5
        %v662 = vmul.f32 %v646, -12.5
        %v663 = vmul.f32 %v647, -12.5
        %v664 = vmul.f32 %v648, -12.5
        %v665 = vmul.f32 %v649, -12.5
        %v666 = vmul.f32 %v650, -12.5
        %v667 = vmul.f32 %v651, -12.5
        %v668 = vmul.f32 %v652, -12.5
        %v676 = vunpack.c.l.b16 %v392
        %v677 = vunpack.c.l.b16 %v393
        %v678 = vunpack.c.l.b16 %v394
        %v679 = vunpack.c.l.b16 %v395
        %v680 = vunpack.c.l.b16 %v396
        %v681 = vunpack.c.l.b16 %v397
        %v682 = vunpack.c.l.b16 %v398
        %v683 = vpack.c.b16 %v677, %v676
        %v684 = vpack.c.b16 %v679, %v678
        %v685 = vpack.c.b16 %v681, %v680
        %v686 = vpack.c.b16 %v682, %v682
        %vm687 = vcmask 64512
        %v689 = vsel %vm687, %v384, 0
        %v692 = vsel %vm687, %v385, 0
        %v695 = vsel %vm687, %v386, 0
        %v698 = vsel %vm687, %v387, 0
        %v701 = vsel %vm687, %v388, 0
        %v704 = vsel %vm687, %v389, 0
        %v707 = vsel %vm687, %v390, 0
        %v710 = vsel %vm687, %v391, 0
        %v713 = vsel %vm687, %v683, 0
        %v716 = vsel %vm687, %v684, 0
        %v719 = vsel %vm687, %v685, 0
        %v722 = vsel %vm687, %v686, 0
        %724 = vmatpush.bf16.xpose.msra.mxu0 0
        %725 = vmatpush.bf16.xpose.msra.mxu0 0
        %726 = vmatpush.bf16.xpose.msra.mxu0 0
        %727 = vmatpush.bf16.xpose.msra.mxu0 0
        %728 = vmatpush.bf16.xpose.msra.mxu0 %v722
        %729 = vmatpush.bf16.xpose.msra.mxu0 %v719
        %730 = vmatpush.bf16.xpose.msra.mxu0 %v716
        %731 = vmatpush.bf16.xpose.msra.mxu0 %v713
        %732 = vmatmul.bf16.gmra.mxu0 %v689
        %v733 = vpop.f32.mrf.mxu0
        %v734 = vadd.f32 %v653, %v733
        %v735 = vpop.f32.mrf.mxu0
        %v736 = vadd.f32 %v654, %v735
        %737 = vmatmul.bf16.gmra.mxu0 %v692
        %v738 = vpop.f32.mrf.mxu0
        %v739 = vadd.f32 %v655, %v738
        %v740 = vpop.f32.mrf.mxu0
        %v741 = vadd.f32 %v656, %v740
        %742 = vmatmul.bf16.gmra.mxu0 %v695
        %v743 = vpop.f32.mrf.mxu0
        %v744 = vadd.f32 %v657, %v743
        %v745 = vpop.f32.mrf.mxu0
        %v746 = vadd.f32 %v658, %v745
        %747 = vmatmul.bf16.gmra.mxu0 %v698
        %v748 = vpop.f32.mrf.mxu0
        %v749 = vadd.f32 %v659, %v748
        %v750 = vpop.f32.mrf.mxu0
        %v751 = vadd.f32 %v660, %v750
        %752 = vmatmul.bf16.gmra.mxu0 %v701
        %v753 = vpop.f32.mrf.mxu0
        %v754 = vadd.f32 %v661, %v753
        %v755 = vpop.f32.mrf.mxu0
        %v756 = vadd.f32 %v662, %v755
        %757 = vmatmul.bf16.gmra.mxu0 %v704
        %v758 = vpop.f32.mrf.mxu0
        %v759 = vadd.f32 %v663, %v758
        %v760 = vpop.f32.mrf.mxu0
        %v761 = vadd.f32 %v664, %v760
        %762 = vmatmul.bf16.gmra.mxu0 %v707
        %v763 = vpop.f32.mrf.mxu0
        %v764 = vadd.f32 %v665, %v763
        %v765 = vpop.f32.mrf.mxu0
        %v766 = vadd.f32 %v666, %v765
        %767 = vmatmul.bf16.gmra.mxu0 %v710
        %v768 = vpop.f32.mrf.mxu0
        %v769 = vadd.f32 %v667, %v768
        %v770 = vpop.f32.mrf.mxu0
        %v771 = vadd.f32 %v668, %v770
        %772 = vdwg.mxu0
        %vm773 = vcmask 400384
        %v774 = vsel %vm773, %v734, -inf
        %775 = vmax.xlane.f32.xlu0 %v774
        %v776 = vpop.xlane.xlu0 %775
        %v777 = vsel %vm773, %v736, -inf
        %778 = vmax.xlane.f32.xlu0 %v777
        %v779 = vpop.xlane.xlu0 %778
        %v780 = vsel %vm773, %v739, -inf
        %781 = vmax.xlane.f32.xlu0 %v780
        %v782 = vpop.xlane.xlu0 %781
        %v783 = vsel %vm773, %v741, -inf
        %784 = vmax.xlane.f32.xlu0 %v783
        %v785 = vpop.xlane.xlu0 %784
        %v786 = vsel %vm773, %v744, -inf
        %787 = vmax.xlane.f32.xlu0 %v786
        %v788 = vpop.xlane.xlu0 %787
        %v789 = vsel %vm773, %v746, -inf
        %790 = vmax.xlane.f32.xlu0 %v789
        %v791 = vpop.xlane.xlu0 %790
        %v792 = vsel %vm773, %v749, -inf
        %793 = vmax.xlane.f32.xlu0 %v792
        %v794 = vpop.xlane.xlu0 %793
        %v795 = vsel %vm773, %v751, -inf
        %796 = vmax.xlane.f32.xlu0 %v795
        %v797 = vpop.xlane.xlu0 %796
        %v798 = vsel %vm773, %v754, -inf
        %799 = vmax.xlane.f32.xlu0 %v798
        %v800 = vpop.xlane.xlu0 %799
        %v801 = vsel %vm773, %v756, -inf
        %802 = vmax.xlane.f32.xlu0 %v801
        %v803 = vpop.xlane.xlu0 %802
        %v804 = vsel %vm773, %v759, -inf
        %805 = vmax.xlane.f32.xlu0 %v804
        %v806 = vpop.xlane.xlu0 %805
        %v807 = vsel %vm773, %v761, -inf
        %808 = vmax.xlane.f32.xlu0 %v807
        %v809 = vpop.xlane.xlu0 %808
        %v810 = vsel %vm773, %v764, -inf
        %811 = vmax.xlane.f32.xlu0 %v810
        %v812 = vpop.xlane.xlu0 %811
        %v813 = vsel %vm773, %v766, -inf
        %814 = vmax.xlane.f32.xlu0 %v813
        %v815 = vpop.xlane.xlu0 %814
        %v816 = vsel %vm773, %v769, -inf
        %817 = vmax.xlane.f32.xlu0 %v816
        %v818 = vpop.xlane.xlu0 %817
        %v819 = vsel %vm773, %v771, -inf
        %820 = vmax.xlane.f32.xlu0 %v819
        %v821 = vpop.xlane.xlu0 %820
        %v822 = vsub.f32 %v734, %v776
        %v823 = vsub.f32 %v736, %v779
        %v824 = vsub.f32 %v739, %v782
        %v825 = vsub.f32 %v741, %v785
        %v826 = vsub.f32 %v744, %v788
        %v827 = vsub.f32 %v746, %v791
        %v828 = vsub.f32 %v749, %v794
        %v829 = vsub.f32 %v751, %v797
        %v830 = vsub.f32 %v754, %v800
        %v831 = vsub.f32 %v756, %v803
        %v832 = vsub.f32 %v759, %v806
        %v833 = vsub.f32 %v761, %v809
        %v834 = vsub.f32 %v764, %v812
        %v835 = vsub.f32 %v766, %v815
        %v836 = vsub.f32 %v769, %v818
        %v837 = vsub.f32 %v771, %v821
        %v838 = vmul.f32 %v822, 1.442695
        %v839 = vpow.pop %v838
        %v840 = vmul.f32 %v823, 1.442695
        %v841 = vpow.pop %v840
        %v842 = vmul.f32 %v824, 1.442695
        %v843 = vpow.pop %v842
        %v844 = vmul.f32 %v825, 1.442695
        %v845 = vpow.pop %v844
        %v846 = vmul.f32 %v826, 1.442695
        %v847 = vpow.pop %v846
        %v848 = vmul.f32 %v827, 1.442695
        %v849 = vpow.pop %v848
        %v850 = vmul.f32 %v828, 1.442695
        %v851 = vpow.pop %v850
        %v852 = vmul.f32 %v829, 1.442695
        %v853 = vpow.pop %v852
        %v854 = vmul.f32 %v830, 1.442695
        %v855 = vpow.pop %v854
        %v856 = vmul.f32 %v831, 1.442695
        %v857 = vpow.pop %v856
        %v858 = vmul.f32 %v832, 1.442695
        %v859 = vpow.pop %v858
        %v860 = vmul.f32 %v833, 1.442695
        %v861 = vpow.pop %v860
        %v862 = vmul.f32 %v834, 1.442695
        %v863 = vpow.pop %v862
        %v864 = vmul.f32 %v835, 1.442695
        %v865 = vpow.pop %v864
        %v866 = vmul.f32 %v836, 1.442695
        %v867 = vpow.pop %v866
        %v868 = vmul.f32 %v837, 1.442695
        %v869 = vpow.pop %v868
        %v870 = vsel %vm773, %v839, 0.0
        %871 = vadd.xlane.f32.xlu0 %v870
        %v872 = vpop.xlane.xlu0 %871
        %v873 = vsel %vm773, %v841, 0.0
        %874 = vadd.xlane.f32.xlu0 %v873
        %v875 = vpop.xlane.xlu0 %874
        %v876 = vsel %vm773, %v843, 0.0
        %877 = vadd.xlane.f32.xlu0 %v876
        %v878 = vpop.xlane.xlu0 %877
        %v879 = vsel %vm773, %v845, 0.0
        %880 = vadd.xlane.f32.xlu0 %v879
        %v881 = vpop.xlane.xlu0 %880
        %v882 = vsel %vm773, %v847, 0.0
        %883 = vadd.xlane.f32.xlu0 %v882
        %v884 = vpop.xlane.xlu0 %883
        %v885 = vsel %vm773, %v849, 0.0
        %886 = vadd.xlane.f32.xlu0 %v885
        %v887 = vpop.xlane.xlu0 %886
        %v888 = vsel %vm773, %v851, 0.0
        %889 = vadd.xlane.f32.xlu0 %v888
        %v890 = vpop.xlane.xlu0 %889
        %v891 = vsel %vm773, %v853, 0.0
        %892 = vadd.xlane.f32.xlu0 %v891
        %v893 = vpop.xlane.xlu0 %892
        %v894 = vsel %vm773, %v855, 0.0
        %895 = vadd.xlane.f32.xlu0 %v894
        %v896 = vpop.xlane.xlu0 %895
        %v897 = vsel %vm773, %v857, 0.0
        %898 = vadd.xlane.f32.xlu0 %v897
        %v899 = vpop.xlane.xlu0 %898
        %v900 = vsel %vm773, %v859, 0.0
        %901 = vadd.xlane.f32.xlu0 %v900
        %v902 = vpop.xlane.xlu0 %901
        %v903 = vsel %vm773, %v861, 0.0
        %904 = vadd.xlane.f32.xlu0 %v903
        %v905 = vpop.xlane.xlu0 %904
        %v906 = vsel %vm773, %v863, 0.0
        %907 = vadd.xlane.f32.xlu0 %v906
        %v908 = vpop.xlane.xlu0 %907
        %v909 = vsel %vm773, %v865, 0.0
        %910 = vadd.xlane.f32.xlu0 %v909
        %v911 = vpop.xlane.xlu0 %910
        %v912 = vsel %vm773, %v867, 0.0
        %913 = vadd.xlane.f32.xlu0 %v912
        %v914 = vpop.xlane.xlu0 %913
        %v915 = vsel %vm773, %v869, 0.0
        %916 = vadd.xlane.f32.xlu0 %v915
        %v917 = vpop.xlane.xlu0 %916
        %v918 = vrcp.pop %v872
        %v919 = vrcp.pop %v875
        %v920 = vrcp.pop %v878
        %v921 = vrcp.pop %v881
        %v922 = vrcp.pop %v884
        %v923 = vrcp.pop %v887
        %v924 = vrcp.pop %v890
        %v925 = vrcp.pop %v893
        %v926 = vrcp.pop %v896
        %v927 = vrcp.pop %v899
        %v928 = vrcp.pop %v902
        %v929 = vrcp.pop %v905
        %v930 = vrcp.pop %v908
        %v931 = vrcp.pop %v911
        %v932 = vrcp.pop %v914
        %v933 = vrcp.pop %v917
        %v934 = vmul.f32 %v839, %v918
        %v935 = vmul.f32 %v841, %v919
        %v936 = vmul.f32 %v843, %v920
        %v937 = vmul.f32 %v845, %v921
        %v938 = vmul.f32 %v847, %v922
        %v939 = vmul.f32 %v849, %v923
        %v940 = vmul.f32 %v851, %v924
        %v941 = vmul.f32 %v853, %v925
        %v942 = vmul.f32 %v855, %v926
        %v943 = vmul.f32 %v857, %v927
        %v944 = vmul.f32 %v859, %v928
        %v945 = vmul.f32 %v861, %v929
        %v946 = vmul.f32 %v863, %v930
        %v947 = vmul.f32 %v865, %v931
        %v948 = vmul.f32 %v867, %v932
        %v949 = vmul.f32 %v869, %v933
        %v950 = vpack.c.bf16 %v935, %v934
        %v951 = vpack.c.bf16 %v937, %v936
        %v952 = vpack.c.bf16 %v939, %v938
        %v953 = vpack.c.bf16 %v941, %v940
        %v954 = vpack.c.bf16 %v943, %v942
        %v955 = vpack.c.bf16 %v945, %v944
        %v956 = vpack.c.bf16 %v947, %v946
        %v957 = vpack.c.bf16 %v949, %v948
        %v958 = vld [vmem:[%s308] sm:$0xf]
        %v959 = vld [vmem:[%s308 + $0x4] sm:$0xf]
        %v960 = vld [vmem:[%s308 + $0x8] sm:$0xf]
        %v961 = vld [vmem:[%s308 + $0xc] sm:$0xf]
        %v962 = vld [vmem:[%s308 + $0x10] sm:$0xf]
        %v963 = vld [vmem:[%s308 + $0x14] sm:$0xf]
        %v964 = vld [vmem:[%s308 + $0x18] sm:$0x1]
        %vm965 = vcmp.eq.s32.totalorder %v553, 4
        %v966 = vsel %vm965, 1, 0
        %vm967 = vcmp.eq.s32.totalorder %v966, 1
        %v968 = vsel %vm967, %v520, 0.0
        %v969 = vsel %vm967, %v521, 0.0
        %v970 = vsel %vm967, %v522, 0.0
        %v971 = vsel %vm967, %v523, 0.0
        %v972 = vsel %vm967, %v524, 0.0
        %v973 = vsel %vm967, %v525, 0.0
        %v974 = vsel %vm967, %v526, 0.0
        %v975 = vsel %vm967, %v527, 0.0
        %v976 = vsel %vm967, %v528, 0.0
        %v977 = vsel %vm967, %v529, 0.0
        %v978 = vsel %vm967, %v530, 0.0
        %v979 = vsel %vm967, %v531, 0.0
        %v980 = vsel %vm967, %v532, 0.0
        %v981 = vsel %vm967, %v533, 0.0
        %v982 = vsel %vm967, %v534, 0.0
        %v983 = vsel %vm967, %v535, 0.0
        %vm984 = vcmp.eq.s32.totalorder %v553, 5
        %v985 = vsel %vm984, 1, 0
        %vm986 = vcmp.eq.s32.totalorder %v985, 1
        %v987 = vsel %vm986, %v536, 0.0
        %v988 = vsel %vm986, %v537, 0.0
        %v989 = vsel %vm986, %v538, 0.0
        %v990 = vsel %vm986, %v539, 0.0
        %v991 = vsel %vm986, %v540, 0.0
        %v992 = vsel %vm986, %v541, 0.0
        %v993 = vsel %vm986, %v542, 0.0
        %v994 = vsel %vm986, %v543, 0.0
        %v995 = vsel %vm986, %v544, 0.0
        %v996 = vsel %vm986, %v545, 0.0
        %v997 = vsel %vm986, %v546, 0.0
        %v998 = vsel %vm986, %v547, 0.0
        %v999 = vsel %vm986, %v548, 0.0
        %v1000 = vsel %vm986, %v549, 0.0
        %v1001 = vsel %vm986, %v550, 0.0
        %v1002 = vsel %vm986, %v551, 0.0
        %v1003 = vadd.f32 %v968, %v987
        %v1004 = vadd.f32 %v969, %v988
        %v1005 = vadd.f32 %v970, %v989
        %v1006 = vadd.f32 %v971, %v990
        %v1007 = vadd.f32 %v972, %v991
        %v1008 = vadd.f32 %v973, %v992
        %v1009 = vadd.f32 %v974, %v993
        %v1010 = vadd.f32 %v975, %v994
        %v1011 = vadd.f32 %v976, %v995
        %v1012 = vadd.f32 %v977, %v996
        %v1013 = vadd.f32 %v978, %v997
        %v1014 = vadd.f32 %v979, %v998
        %v1015 = vadd.f32 %v980, %v999
        %v1016 = vadd.f32 %v981, %v1000
        %v1017 = vadd.f32 %v982, %v1001
        %v1018 = vadd.f32 %v983, %v1002
        %v1019 = vld [vmem:[%s4] sm:$0x1]
        %v1021 = vperm.slane %v1019, 0
        %v1030 = vunpack.c.l.b16 %v958
        %v1031 = vunpack.c.l.b16 %v959
        %v1032 = vunpack.c.l.b16 %v960
        %v1033 = vunpack.c.l.b16 %v961
        %v1034 = vunpack.c.l.b16 %v962
        %v1035 = vunpack.c.l.b16 %v963
        %v1036 = vunpack.c.l.b16 %v964
        %v1037 = vpack.c.b16 %v1031, %v1030
        %v1038 = vpack.c.b16 %v1033, %v1032
        %v1039 = vpack.c.b16 %v1035, %v1034
        %v1040 = vpack.c.b16 %v1036, %v1036
        %v1045 = vsel %vm773, %v950, 0
        %v1048 = vsel %vm773, %v951, 0
        %v1051 = vsel %vm773, %v952, 0
        %v1054 = vsel %vm773, %v953, 0
        %v1057 = vsel %vm773, %v954, 0
        %v1060 = vsel %vm773, %v955, 0
        %v1063 = vsel %vm773, %v956, 0
        %v1066 = vsel %vm773, %v957, 0
        %vm1068 = vcmask 1040384
        %v1069 = vsel 0, 4294967295, 65535
        %v1070 = vsel %vm1068, %v1069, 0
        %v1072 = vand.u32 %v1040, %v1070
        %1074 = vmatpush.bf16.msra.mxu0 0
        %1075 = vmatpush.bf16.msra.mxu0 0
        %1076 = vmatpush.bf16.msra.mxu0 0
        %1077 = vmatpush.bf16.msra.mxu0 0
        %1078 = vmatpush.bf16.msra.mxu0 %v1072
        %1079 = vmatpush.bf16.msra.mxu0 %v1039
        %1080 = vmatpush.bf16.msra.mxu0 %v1038
        %1081 = vmatpush.bf16.msra.mxu0 %v1037
        %1082 = vmatmul.bf16.gmra.mxu0 %v1045
        %v1083 = vpop.f32.mrf.mxu0
        %v1084 = vadd.f32 %v1021, %v1083
        %v1085 = vpop.f32.mrf.mxu0
        %v1086 = vadd.f32 %v1021, %v1085
        %1087 = vmatmul.bf16.gmra.mxu0 %v1048
        %v1088 = vpop.f32.mrf.mxu0
        %v1089 = vadd.f32 %v1021, %v1088
        %v1090 = vpop.f32.mrf.mxu0
        %v1091 = vadd.f32 %v1021, %v1090
        %1092 = vmatmul.bf16.gmra.mxu0 %v1051
        %v1093 = vpop.f32.mrf.mxu0
        %v1094 = vadd.f32 %v1021, %v1093
        %v1095 = vpop.f32.mrf.mxu0
        %v1096 = vadd.f32 %v1021, %v1095
        %1097 = vmatmul.bf16.gmra.mxu0 %v1054
        %v1098 = vpop.f32.mrf.mxu0
        %v1099 = vadd.f32 %v1021, %v1098
        %v1100 = vpop.f32.mrf.mxu0
        %v1101 = vadd.f32 %v1021, %v1100
        %1102 = vmatmul.bf16.gmra.mxu0 %v1057
        %v1103 = vpop.f32.mrf.mxu0
        %v1104 = vadd.f32 %v1021, %v1103
        %v1105 = vpop.f32.mrf.mxu0
        %v1106 = vadd.f32 %v1021, %v1105
        %1107 = vmatmul.bf16.gmra.mxu0 %v1060
        %v1108 = vpop.f32.mrf.mxu0
        %v1109 = vadd.f32 %v1021, %v1108
        %v1110 = vpop.f32.mrf.mxu0
        %v1111 = vadd.f32 %v1021, %v1110
        %1112 = vmatmul.bf16.gmra.mxu0 %v1063
        %v1113 = vpop.f32.mrf.mxu0
        %v1114 = vadd.f32 %v1021, %v1113
        %v1115 = vpop.f32.mrf.mxu0
        %v1116 = vadd.f32 %v1021, %v1115
        %1117 = vmatmul.bf16.gmra.mxu0 %v1066
        %v1118 = vpop.f32.mrf.mxu0
        %v1119 = vadd.f32 %v1021, %v1118
        %v1120 = vpop.f32.mrf.mxu0
        %v1121 = vadd.f32 %v1021, %v1120
        %1122 = vdwg.mxu0
        %v1123 = vadd.f32 %v1084, %v1003
        %v1124 = vadd.f32 %v1086, %v1004
        %v1125 = vadd.f32 %v1089, %v1005
        %v1126 = vadd.f32 %v1091, %v1006
        %v1127 = vadd.f32 %v1094, %v1007
        %v1128 = vadd.f32 %v1096, %v1008
        %v1129 = vadd.f32 %v1099, %v1009
        %v1130 = vadd.f32 %v1101, %v1010
        %v1131 = vadd.f32 %v1104, %v1011
        %v1132 = vadd.f32 %v1106, %v1012
        %v1133 = vadd.f32 %v1109, %v1013
        %v1134 = vadd.f32 %v1111, %v1014
        %v1135 = vadd.f32 %v1114, %v1015
        %v1136 = vadd.f32 %v1116, %v1016
        %v1137 = vadd.f32 %v1119, %v1017
        %v1138 = vadd.f32 %v1121, %v1018
        %1139 = vst [vmem:[%s280] sm:$0xff] %v1123
        %1140 = vst [vmem:[%s280 + $0x8] sm:$0xff] %v1124
        %1141 = vst [vmem:[%s280 + $0x10] sm:$0xff] %v1125
        %1142 = vst [vmem:[%s280 + $0x18] sm:$0xff] %v1126
        %1143 = vst [vmem:[%s280 + $0x20] sm:$0xff] %v1127
        %1144 = vst [vmem:[%s280 + $0x28] sm:$0xff] %v1128
        %1145 = vst [vmem:[%s280 + $0x30] sm:$0xff] %v1129
        %1146 = vst [vmem:[%s280 + $0x38] sm:$0xff] %v1130
        %1147 = vst [vmem:[%s280 + $0x40] sm:$0xff] %v1131
        %1148 = vst [vmem:[%s280 + $0x48] sm:$0xff] %v1132
        %1149 = vst [vmem:[%s280 + $0x50] sm:$0xff] %v1133
        %1150 = vst [vmem:[%s280 + $0x58] sm:$0xff] %v1134
        %1151 = vst [vmem:[%s280 + $0x60] sm:$0xff] %v1135
        %1152 = vst [vmem:[%s280 + $0x68] sm:$0xff] %v1136
        %1153 = vst [vmem:[%s280 + $0x70] sm:$0xff] %v1137
        %1154 = vst [vmem:[%s280 + $0x78] sm:$0xff] %v1138
        %s1155 = sand.u32 %s160, 1
        %s1156 = sand.u32 %s160, 1
        %s1157 = smul.addr %s1156, 128
        %s1158 = scalar_lea.vmem [#allocation2], %s1157
        // Predicated region
        $region41: #{self_attention_block.3} parent=39 // pred_check
          %p1159 = pneg %p170
        $region42: #{self_attention_block.3} parent=39 // pred_check_branch
          %1161 = sbr.rel (%p1159) target = $region44
        $region43: #{self_attention_block.3} parent=39 // pred_region
          %s1162 = smul.u32 16, %s21
          %s1163 = ssub.s32 29, %s1162
          %p1164 = scmp.lt.s32.totalorder %s1163, 16
          %s1165 = scalar_select %p1164, %s1163, 16
          %s1166 = smul.u32 8, %s1165
          %p1167 = scmp.ne.s32.totalorder 0, %s1166
          %s1168 = smul.addr %s20, 29
          %s1169 = sadd.s32 %s1162, %s1168
          %s1170 = smul.addr %s1169, 8
          %s1171 = scalar_lea.vmem %s5, %s1170
          // Predicated region
          $region45: #{self_attention_block.3} parent=43 // pred_check
            %p1172 = pneg %p1167
          $region46: #{self_attention_block.3} parent=43 // pred_check_branch
            %1174 = sbr.rel (%p1172) target = $region48
          $region47: #{self_attention_block.3} parent=43 // pred_region
            // Predicated region
            $region49: #{self_attention_block.3} parent=47 // pred_check
              _
            $region50: #{self_attention_block.3} parent=47 // pred_check_branch
              %1176 = sbr.rel (0) target = $region52
            $region51: #{self_attention_block.3} parent=47 // pred_region
              // Predicated region
              $region71: #{self_attention_block.3} parent=51 // pred_check
                _
              $region72: #{self_attention_block.3} parent=51 // pred_check_branch
                %1256 = sbr.rel (0) target = $region74
              $region73: #{self_attention_block.3} parent=51 // pred_region
                %s1257 = sshrl.u32 %s1165, 4
                // While loop
                $region75: #{self_attention_block.3} parent=73 // loop_pre_header
                  _
                $region76: #{self_attention_block.3} parent=73 // loop_header
                  %s1259 = sphi 0, %s1261
                  %p1260 = scmp.ge.s32.totalorder %s1259, %s1257
                  %s1264 = sphi 0, %s1301
                  %s1265 = sphi %s1158, %s1304
                  %s1266 = sphi %s1171, %s1305
                $region77: #{self_attention_block.3} parent=73 // loop_header_branch
                  %1263 = sbr.rel (%p1260) target = $region81
                $region78: #{self_attention_block.3} parent=73 // loop_body
                  %v1267 = vld [vmem:[%s1265] sm:$0xff]
                  %1268 = vst [vmem:[%s1266] sm:$0xff] %v1267
                  %v1269 = vld [vmem:[%s1265 + $0x8] sm:$0xff]
                  %1270 = vst [vmem:[%s1266 + $0x8] sm:$0xff] %v1269
                  %v1271 = vld [vmem:[%s1265 + $0x10] sm:$0xff]
                  %1272 = vst [vmem:[%s1266 + $0x10] sm:$0xff] %v1271
                  %v1273 = vld [vmem:[%s1265 + $0x18] sm:$0xff]
                  %1274 = vst [vmem:[%s1266 + $0x18] sm:$0xff] %v1273
                  %v1275 = vld [vmem:[%s1265 + $0x20] sm:$0xff]
                  %1276 = vst [vmem:[%s1266 + $0x20] sm:$0xff] %v1275
                  %v1277 = vld [vmem:[%s1265 + $0x28] sm:$0xff]
                  %1278 = vst [vmem:[%s1266 + $0x28] sm:$0xff] %v1277
                  %v1279 = vld [vmem:[%s1265 + $0x30] sm:$0xff]
                  %1280 = vst [vmem:[%s1266 + $0x30] sm:$0xff] %v1279
                  %v1281 = vld [vmem:[%s1265 + $0x38] sm:$0xff]
                  %1282 = vst [vmem:[%s1266 + $0x38] sm:$0xff] %v1281
                  %v1283 = vld [vmem:[%s1265 + $0x40] sm:$0xff]
                  %1284 = vst [vmem:[%s1266 + $0x40] sm:$0xff] %v1283
                  %v1285 = vld [vmem:[%s1265 + $0x48] sm:$0xff]
                  %1286 = vst [vmem:[%s1266 + $0x48] sm:$0xff] %v1285
                  %v1287 = vld [vmem:[%s1265 + $0x50] sm:$0xff]
                  %1288 = vst [vmem:[%s1266 + $0x50] sm:$0xff] %v1287
                  %v1289 = vld [vmem:[%s1265 + $0x58] sm:$0xff]
                  %1290 = vst [vmem:[%s1266 + $0x58] sm:$0xff] %v1289
                  %v1291 = vld [vmem:[%s1265 + $0x60] sm:$0xff]
                  %1292 = vst [vmem:[%s1266 + $0x60] sm:$0xff] %v1291
                  %v1293 = vld [vmem:[%s1265 + $0x68] sm:$0xff]
                  %1294 = vst [vmem:[%s1266 + $0x68] sm:$0xff] %v1293
                  %v1295 = vld [vmem:[%s1265 + $0x70] sm:$0xff]
                  %1296 = vst [vmem:[%s1266 + $0x70] sm:$0xff] %v1295
                  %v1297 = vld [vmem:[%s1265 + $0x78] sm:$0xff]
                  %1298 = vst [vmem:[%s1266 + $0x78] sm:$0xff] %v1297
                  %s1299 = sadd.s32 1, %s1264
                  %p1300 = scmp.ge.s32.totalorder %s1299, %s1257
                  %s1301 = scalar_select %p1300, 0, %s1299
                  %s1302 = smul.u32 %s1301, 128
                  %s1303 = smul.u32 %s1301, 128
                  %s1304 = scalar_lea.vmem %s1158, %s1302 [#allocation2]
                  %s1305 = scalar_lea.vmem %s1171, %s1303
                $region79: #{self_attention_block.3} parent=73 // loop_footer
                  %s1261 = sadd.s32 %s1259, 1
                $region80: #{self_attention_block.3} parent=73 // loop_footer_branch
                  %1258 = sbr.rel target = $region76
                $region81: #{self_attention_block.3} parent=73 // loop_exit
                  _
                %s1306 = sshrl.u32 %s1165, 4
                %s1307 = sand.u32 %s1165, 15
                %s1308 = smul.u32 %s1306, 16
                %s1309 = smul.u32 8, %s1308
                %s1310 = scalar_lea.vmem %s1158, %s1309 [#allocation2]
                %s1311 = smul.u32 8, %s1308
                %s1312 = scalar_lea.vmem %s1171, %s1311
                // While loop
                $region82: #{self_attention_block.3} parent=73 // loop_pre_header
                  _
                $region83: #{self_attention_block.3} parent=73 // loop_header
                  %s1314 = sphi 0, %s1316
                  %p1315 = scmp.ge.s32.totalorder %s1314, %s1307
                  %s1319 = sphi 0, %s1326
                  %s1320 = sphi %s1310, %s1329
                  %s1321 = sphi %s1312, %s1330
                $region84: #{self_attention_block.3} parent=73 // loop_header_branch
                  %1318 = sbr.rel (%p1315) target = $region88
                $region85: #{self_attention_block.3} parent=73 // loop_body
                  %v1322 = vld [vmem:[%s1320] sm:$0xff]
                  %1323 = vst [vmem:[%s1321] sm:$0xff] %v1322
                  %s1324 = sadd.s32 1, %s1319
                  %p1325 = scmp.ge.s32.totalorder %s1324, %s1307
                  %s1326 = scalar_select %p1325, 0, %s1324
                  %s1327 = smul.u32 %s1326, 8
                  %s1328 = smul.u32 %s1326, 8
                  %s1329 = scalar_lea.vmem %s1310, %s1327 [#allocation2]
                  %s1330 = scalar_lea.vmem %s1312, %s1328
                $region86: #{self_attention_block.3} parent=73 // loop_footer
                  %s1316 = sadd.s32 %s1314, 1
                $region87: #{self_attention_block.3} parent=73 // loop_footer_branch
                  %1313 = sbr.rel target = $region83
                $region88: #{self_attention_block.3} parent=73 // loop_exit
                  _
              $region74: #{self_attention_block.3} parent=51 // pred_fallthru
                _
              // Predicated region
              $region89: #{self_attention_block.3} parent=51 // pred_check
                _
              $region90: #{self_attention_block.3} parent=51 // pred_check_branch
                %1332 = sbr.rel target = $region92
              $region91: #{self_attention_block.3} parent=51 // pred_region
                _
              $region92: #{self_attention_block.3} parent=51 // pred_fallthru
                _
            $region52: #{self_attention_block.3} parent=47 // pred_fallthru
              _
            // Predicated region
            $region53: #{self_attention_block.3} parent=47 // pred_check
              _
            $region54: #{self_attention_block.3} parent=47 // pred_check_branch
              %1178 = sbr.rel target = $region56
            $region55: #{self_attention_block.3} parent=47 // pred_region
              %s1180 = ssub.s32 256, 1
              %s1181 = sshrl.u32 %s1165, 4
              // While loop
              $region57: #{self_attention_block.3} parent=55 // loop_pre_header
                _
              $region58: #{self_attention_block.3} parent=55 // loop_header
                %s1183 = sphi 0, %s1185
                %p1184 = scmp.ge.s32.totalorder %s1183, %s1181
                %s1188 = sphi 0, %s1225
                %s1189 = sphi %s1158, %s1228
                %s1190 = sphi %s1171, %s1229
              $region59: #{self_attention_block.3} parent=55 // loop_header_branch
                %1187 = sbr.rel (%p1184) target = $region63
              $region60: #{self_attention_block.3} parent=55 // loop_body
                %v1191 = vld [vmem:[%s1189] sm:%s1180]
                %1192 = vst [vmem:[%s1190] sm:%s1180] %v1191
                %v1193 = vld [vmem:[%s1189 + $0x8] sm:%s1180]
                %1194 = vst [vmem:[%s1190 + $0x8] sm:%s1180] %v1193
                %v1195 = vld [vmem:[%s1189 + $0x10] sm:%s1180]
                %1196 = vst [vmem:[%s1190 + $0x10] sm:%s1180] %v1195
                %v1197 = vld [vmem:[%s1189 + $0x18] sm:%s1180]
                %1198 = vst [vmem:[%s1190 + $0x18] sm:%s1180] %v1197
                %v1199 = vld [vmem:[%s1189 + $0x20] sm:%s1180]
                %1200 = vst [vmem:[%s1190 + $0x20] sm:%s1180] %v1199
                %v1201 = vld [vmem:[%s1189 + $0x28] sm:%s1180]
                %1202 = vst [vmem:[%s1190 + $0x28] sm:%s1180] %v1201
                %v1203 = vld [vmem:[%s1189 + $0x30] sm:%s1180]
                %1204 = vst [vmem:[%s1190 + $0x30] sm:%s1180] %v1203
                %v1205 = vld [vmem:[%s1189 + $0x38] sm:%s1180]
                %1206 = vst [vmem:[%s1190 + $0x38] sm:%s1180] %v1205
                %v1207 = vld [vmem:[%s1189 + $0x40] sm:%s1180]
                %1208 = vst [vmem:[%s1190 + $0x40] sm:%s1180] %v1207
                %v1209 = vld [vmem:[%s1189 + $0x48] sm:%s1180]
                %1210 = vst [vmem:[%s1190 + $0x48] sm:%s1180] %v1209
                %v1211 = vld [vmem:[%s1189 + $0x50] sm:%s1180]
                %1212 = vst [vmem:[%s1190 + $0x50] sm:%s1180] %v1211
                %v1213 = vld [vmem:[%s1189 + $0x58] sm:%s1180]
                %1214 = vst [vmem:[%s1190 + $0x58] sm:%s1180] %v1213
                %v1215 = vld [vmem:[%s1189 + $0x60] sm:%s1180]
                %1216 = vst [vmem:[%s1190 + $0x60] sm:%s1180] %v1215
                %v1217 = vld [vmem:[%s1189 + $0x68] sm:%s1180]
                %1218 = vst [vmem:[%s1190 + $0x68] sm:%s1180] %v1217
                %v1219 = vld [vmem:[%s1189 + $0x70] sm:%s1180]
                %1220 = vst [vmem:[%s1190 + $0x70] sm:%s1180] %v1219
                %v1221 = vld [vmem:[%s1189 + $0x78] sm:%s1180]
                %1222 = vst [vmem:[%s1190 + $0x78] sm:%s1180] %v1221
                %s1223 = sadd.s32 1, %s1188
                %p1224 = scmp.ge.s32.totalorder %s1223, %s1181
                %s1225 = scalar_select %p1224, 0, %s1223
                %s1226 = smul.u32 %s1225, 128
                %s1227 = smul.u32 %s1225, 128
                %s1228 = scalar_lea.vmem %s1158, %s1226 [#allocation2]
                %s1229 = scalar_lea.vmem %s1171, %s1227
              $region61: #{self_attention_block.3} parent=55 // loop_footer
                %s1185 = sadd.s32 %s1183, 1
              $region62: #{self_attention_block.3} parent=55 // loop_footer_branch
                %1182 = sbr.rel target = $region58
              $region63: #{self_attention_block.3} parent=55 // loop_exit
                _
              %s1230 = sshrl.u32 %s1165, 4
              %s1231 = sand.u32 %s1165, 15
              %s1232 = smul.u32 %s1230, 16
              %s1233 = smul.u32 8, %s1232
              %s1234 = scalar_lea.vmem %s1158, %s1233 [#allocation2]
              %s1235 = smul.u32 8, %s1232
              %s1236 = scalar_lea.vmem %s1171, %s1235
              // While loop
              $region64: #{self_attention_block.3} parent=55 // loop_pre_header
                _
              $region65: #{self_attention_block.3} parent=55 // loop_header
                %s1238 = sphi 0, %s1240
                %p1239 = scmp.ge.s32.totalorder %s1238, %s1231
                %s1243 = sphi 0, %s1250
                %s1244 = sphi %s1234, %s1253
                %s1245 = sphi %s1236, %s1254
              $region66: #{self_attention_block.3} parent=55 // loop_header_branch
                %1242 = sbr.rel (%p1239) target = $region70
              $region67: #{self_attention_block.3} parent=55 // loop_body
                %v1246 = vld [vmem:[%s1244] sm:%s1180]
                %1247 = vst [vmem:[%s1245] sm:%s1180] %v1246
                %s1248 = sadd.s32 1, %s1243
                %p1249 = scmp.ge.s32.totalorder %s1248, %s1231
                %s1250 = scalar_select %p1249, 0, %s1248
                %s1251 = smul.u32 %s1250, 8
                %s1252 = smul.u32 %s1250, 8
                %s1253 = scalar_lea.vmem %s1234, %s1251 [#allocation2]
                %s1254 = scalar_lea.vmem %s1236, %s1252
              $region68: #{self_attention_block.3} parent=55 // loop_footer
                %s1240 = sadd.s32 %s1238, 1
              $region69: #{self_attention_block.3} parent=55 // loop_footer_branch
                %1237 = sbr.rel target = $region65
              $region70: #{self_attention_block.3} parent=55 // loop_exit
                _
            $region56: #{self_attention_block.3} parent=47 // pred_fallthru
              _
          $region48: #{self_attention_block.3} parent=43 // pred_fallthru
            _
          %1333 = vnop
        $region44: #{self_attention_block.3} parent=39 // pred_fallthru
          _
      $region40: #{self_attention_block.3} parent=5 // pred_fallthru
        _
      %p1334 = scmp.le.s32.totalorder 2, %s11
      // Predicated region
      $region93: #{self_attention_block.3} parent=5 // pred_check
        %p1335 = pneg %p1334
      $region94: #{self_attention_block.3} parent=5 // pred_check_branch
        %1337 = sbr.rel (%p1335) target = $region96
      $region95: #{self_attention_block.3} parent=5 // pred_region
        %s1338 = ssub.s32 %s11, 2
        // Predicated region
        $region97: #{self_attention_block.3} parent=95 // pred_check
          %p1339 = pneg %p176
        $region98: #{self_attention_block.3} parent=95 // pred_check_branch
          %1341 = sbr.rel (%p1339) target = $region100
        $region99: #{self_attention_block.3} parent=95 // pred_region
          %s1342 = sand.u32 %s161, 1
          %s1343 = sand.u32 %s161, 1
          %s1344 = smul.addr %s1343, 128
          %s1345 = scalar_lea.vmem [#allocation2], %s1344
        $region100: #{self_attention_block.3} parent=95 // pred_fallthru
          _
      $region96: #{self_attention_block.3} parent=5 // pred_fallthru
        _
    $region6: #{self_attention_block.3} parent=1 // loop_footer
      %s15 = sadd.s32 1, %s11
    $region7: #{self_attention_block.3} parent=1 // loop_footer_branch
      %10 = sbr.rel target = $region3
    $region8: #{self_attention_block.3} parent=1 // loop_exit
      _

</llo_original>
